<compile_context>
chip_gen: v7x
topology: tpu7x:2x2x1
jax: 0.10.0
libtpu: 0.0.40
codegen_flags: <defaults>
</compile_context>

<pallas_src>
import functools

import numpy as np
import jax
import jax.numpy as jnp
from jax.experimental import pallas as pl
from jax.experimental.pallas import tpu as pltpu

LANE = 128        # lane width; all minor dims are padded to this
NEG = -1e9        # bias for padded logit lanes (exp() underflows to exactly 0)

K1 = 5 * 28       # 140: conv1 stacked contraction depth (5 dy bands x 28 cols)
K2 = 5 * LANE     # 640: conv2 stacked contraction depth (5 dy bands x 128 lanes)
KF = 4 * LANE     # 512: fc1 stacked contraction depth (4 rows x 128 lanes)


# ---------------------------------------------------------------------------
# Host-side (one-time, numpy) weight repacking
# ---------------------------------------------------------------------------
def _build_band(w, w_in, k_rows):
    """Banded conv+width-pool matrices, one per kernel row dy.

    Input row vector layout (lhs lanes): x_in * Cin + c_in.
    Output columns               (rhs) : qj * 128 + x_pooled * Cout + c_out,
    where qj in {0,1} is the width-pool phase.  B[dy] holds w[co, ci, dy, dx]
    at dx = x_in - (2*x_pooled + qj) whenever 0 <= dx < 5.
    """
    cout, cin, k, _ = w.shape
    w_out = w_in - k + 1
    wp = w_out // 2
    assert w_in * cin <= k_rows and wp * cout <= LANE
    B = np.zeros((k, k_rows, 2 * LANE), np.float32)
    for dy in range(k):
        for qj in range(2):
            for xp in range(wp):
                for dx in range(k):
                    x_in = 2 * xp + qj + dx
                    col = qj * LANE + xp * cout
                    for ci in range(cin):
                        B[dy, x_in * cin + ci, col:col + cout] = w[:, ci, dy, dx]
    return B


def _tile_bias(b, wp):
    """Per-channel bias tiled over pooled x positions, padded to LANE."""
    cout = b.shape[0]
    t = np.zeros((1, LANE), np.float32)
    t[0, :wp * cout] = np.tile(b, wp)
    return t


def _fc1_mat(fc1_w):
    """fc1 weight (50, 320) repacked to a single (512, 64) matrix whose row
    index is y*128 + (x*20 + c), matching the in-kernel lane-concatenation of
    the four y2 rows (PyTorch flatten index is c*16 + y*4 + x); hidden 50->64."""
    h = fc1_w.shape[0]                       # 50
    W = np.zeros((4, LANE, 64), np.float32)
    for y in range(4):
        for x in range(4):
            for c in range(20):
                W[y, x * 20 + c, :h] = fc1_w[:, c * 16 + y * 4 + x]
    return W.reshape(KF, 64)


def _fc2_mat(fc2_w, fc2_b):
    """fc2 as (64, 128); padded logit lanes get bias NEG so they vanish."""
    W = np.zeros((64, LANE), np.float32)
    W[:fc2_w.shape[1], :fc2_w.shape[0]] = fc2_w.T
    b = np.full((1, LANE), NEG, np.float32)
    b[0, :fc2_w.shape[0]] = fc2_b
    return W, b


def prepare_params(params):
    """One-time repack of PyTorch-layout weights into MXU/lane-friendly form."""
    p = {k: np.asarray(v, np.float32) for k, v in params.items()}

    # Stack the dy bands along the contraction dim (row dy*width + lane).
    b1m = _build_band(p["conv1_w"], w_in=28, k_rows=28).reshape(K1, 2 * LANE)
    b2m = _build_band(p["conv2_w"], w_in=12, k_rows=LANE).reshape(K2, 2 * LANE)
    bc1 = _tile_bias(p["conv1_b"], wp=12)                     # (1, 128)
    bc2 = _tile_bias(p["conv2_b"], wp=4)                      # (1, 128)
    w1f = _fc1_mat(p["fc1_w"])                                # (512, 64)
    b1f = np.zeros((1, 64), np.float32)
    b1f[0, :p["fc1_b"].shape[0]] = p["fc1_b"]
    w2f, b2f = _fc2_mat(p["fc2_w"], p["fc2_b"])               # (64,128), (1,128)

    bf16 = lambda a: jnp.asarray(a, jnp.bfloat16)
    f32 = lambda a: jnp.asarray(a, jnp.float32)
    return {
        "b1m": bf16(b1m), "bc1": f32(bc1),
        "b2m": bf16(b2m), "bc2": f32(bc2),
        "w1f": bf16(w1f), "b1f": f32(b1f),
        "w2f": bf16(w2f), "b2f": f32(b2f),
    }


# ---------------------------------------------------------------------------
# Fused Pallas kernel (one batch tile per grid step)
# ---------------------------------------------------------------------------
def _cnn_kernel(x_ref, b1m_ref, bc1_ref, b2m_ref, bc2_ref,
                w1f_ref, b1f_ref, w2f_ref, b2f_ref,
                o_ref, s1_ref, s2_ref):
    f32, bf16 = jnp.float32, jnp.bfloat16
    tb = x_ref.shape[0]

    # ---- conv1 (1 -> 10, k=5) + maxpool(2) + ReLU: ONE K=140 GEMM ---------
    x = x_ref[...]                                            # (tb, 28, 28) f32
    # Stack the 5 dy-shifted row windows along the contraction (lane) dim.
    lhs1 = jnp.concatenate([x[:, dy:dy + 24, :] for dy in range(5)], axis=-1)
    lhs1 = lhs1.reshape(tb * 24, K1).astype(bf16)             # (tb*24, 140)
    acc1 = jnp.dot(lhs1, b1m_ref[...], preferred_element_type=f32)  # (tb*24,256)
    # width-pool: max of the two 128-aligned column halves (qj = 0 / 1)
    s1_ref[...] = jnp.maximum(acc1[:, :LANE], acc1[:, LANE:]).reshape(tb, 24, LANE)
    # height-pool: max of even / odd conv rows (sublane-strided scratch views)
    y1 = jnp.maximum(s1_ref[:, pl.ds(0, 12, stride=2), :],
                     s1_ref[:, pl.ds(1, 12, stride=2), :])
    y1 = jnp.maximum(y1 + bc1_ref[...], 0.0)                  # bias + ReLU (f32)
    y1 = y1.astype(bf16)                                      # (tb, 12, 128)

    # ---- conv2 (10 -> 20, k=5) + maxpool(2) + ReLU: ONE K=640 GEMM --------
    # The 5 shifted windows are full 128-lane blocks -> cheap aligned concat.
    lhs2 = jnp.concatenate([y1[:, dy:dy + 8, :] for dy in range(5)], axis=-1)
    lhs2 = lhs2.reshape(tb * 8, K2)                           # (tb*8, 640) bf16
    acc2 = jnp.dot(lhs2, b2m_ref[...], preferred_element_type=f32)  # (tb*8,256)
    s2_ref[...] = jnp.maximum(acc2[:, :LANE], acc2[:, LANE:]).reshape(tb, 8, LANE)
    y2 = jnp.maximum(s2_ref[:, pl.ds(0, 4, stride=2), :],
                     s2_ref[:, pl.ds(1, 4, stride=2), :])
    y2 = jnp.maximum(y2 + bc2_ref[...], 0.0)
    y2 = y2.astype(bf16)                                      # (tb, 4, 128)

    # ---- fc1 (ONE K=512 GEMM) -> ReLU -> dropout(eval) -> fc2 -> log_softmax
    # TODO(synk): F.dropout is stochastic in training mode; eval-mode identity here.
    h_in = jnp.concatenate([y2[:, r, :] for r in range(4)], axis=-1)  # (tb, 512)
    h = jnp.dot(h_in, w1f_ref[...], preferred_element_type=f32)
    h = jnp.maximum(h + b1f_ref[...], 0.0).astype(bf16)               # (tb, 64)
    logits = jnp.dot(h, w2f_ref[...], preferred_element_type=f32) + b2f_ref[...]
    m = jnp.max(logits, axis=1, keepdims=True)
    s = logits - m
    lse = jnp.log(jnp.sum(jnp.exp(s), axis=1, keepdims=True))
    o_ref[...] = s - lse                                      # (tb, 128) f32


# ---------------------------------------------------------------------------
# Forward wrapper
# ---------------------------------------------------------------------------
def cnn_mnist_forward(x, prep, *, tb=128):
    """x: (N, 1, 28, 28) float32 NCHW (like the PyTorch module). Returns (N, 10)."""
    n = x.shape[0]
    # Clamp the batch tile for tiny batches; keep it a multiple of 8.
    tb = min(int(tb), -(-n // 8) * 8)
    tb = max(8, (tb // 8) * 8)
    n_pad = -(-n // tb) * tb

    xs = x.reshape(n, 28, 28).astype(jnp.float32)              # Cin == 1, stay f32
    if n_pad != n:
        xs = jnp.pad(xs, ((0, n_pad - n), (0, 0), (0, 0)))

    # Advisory cost hint (2*MACs of the actual GEMM formulation).
    flops = 2 * n_pad * (24 * K1 * 2 * LANE + 8 * K2 * 2 * LANE + KF * 64 + 64 * LANE)
    weight_bytes = sum(int(np.prod(v.shape)) * v.dtype.itemsize for v in prep.values())
    bytes_acc = n_pad * 28 * 28 * 4 + n_pad * LANE * 4 + weight_bytes

    out = pl.pallas_call(
        _cnn_kernel,
        out_shape=jax.ShapeDtypeStruct((n_pad, LANE), jnp.float32),
        grid_spec=pltpu.PrefetchScalarGridSpec(
            num_scalar_prefetch=0,
            grid=(n_pad // tb,),
            in_specs=[
                pl.BlockSpec((tb, 28, 28), lambda i: (i, 0, 0)),      # images (f32)
                pl.BlockSpec((K1, 2 * LANE), lambda i: (0, 0)),       # conv1 stacked bands
                pl.BlockSpec((1, LANE), lambda i: (0, 0)),            # conv1 bias
                pl.BlockSpec((K2, 2 * LANE), lambda i: (0, 0)),       # conv2 stacked bands
                pl.BlockSpec((1, LANE), lambda i: (0, 0)),            # conv2 bias
                pl.BlockSpec((KF, 64), lambda i: (0, 0)),             # fc1 stacked weight
                pl.BlockSpec((1, 64), lambda i: (0, 0)),              # fc1 bias
                pl.BlockSpec((64, LANE), lambda i: (0, 0)),           # fc2 weight
                pl.BlockSpec((1, LANE), lambda i: (0, 0)),            # fc2 bias
            ],
            out_specs=pl.BlockSpec((tb, LANE), lambda i: (i, 0)),
            scratch_shapes=[
                pltpu.VMEM((tb, 24, LANE), jnp.float32),   # conv1 W-pooled rows
                pltpu.VMEM((tb, 8, LANE), jnp.float32),    # conv2 W-pooled rows
            ],
        ),
        compiler_params=pltpu.CompilerParams(
            dimension_semantics=("parallel",),
            vmem_limit_bytes=48 * 1024 * 1024),
        cost_estimate=pl.CostEstimate(flops=int(flops),
                                      transcendentals=int(2 * n_pad * LANE),
                                      bytes_accessed=int(bytes_acc)),
    )(xs, prep["b1m"], prep["bc1"], prep["b2m"], prep["bc2"],
      prep["w1f"], prep["b1f"], prep["w2f"], prep["b2f"])

    return out[:n, :10]


# ---------------------------------------------------------------------------
# Deterministic parameter init (PyTorch-shaped, uniform(-1/sqrt(fan_in)))
# ---------------------------------------------------------------------------
def init_params(key):
    ks = jax.random.split(key, 8)

    def u(k, shape, fan_in):
        bound = 1.0 / jnp.sqrt(float(fan_in))
        return jax.random.uniform(k, shape, jnp.float32, -bound, bound)

    return {
        "conv1_w": u(ks[0], (10, 1, 5, 5), 1 * 5 * 5),
        "conv1_b": u(ks[1], (10,), 1 * 5 * 5),
        "conv2_w": u(ks[2], (20, 10, 5, 5), 10 * 5 * 5),
        "conv2_b": u(ks[3], (20,), 10 * 5 * 5),
        "fc1_w":   u(ks[4], (50, 320), 320),
        "fc1_b":   u(ks[5], (50,), 320),
        "fc2_w":   u(ks[6], (10, 50), 50),
        "fc2_b":   u(ks[7], (10,), 50),
    }


if __name__ == "__main__":
    key = jax.random.PRNGKey(0)
    kx, kp = jax.random.split(key)
    # MNIST geometry is forced by the module (flatten to 320 => 28x28 input).
    x = jax.random.normal(kx, (2, 1, 28, 28), jnp.float32)
    params = init_params(kp)
    prep = prepare_params(params)          # one-time host-side weight repack

    fwd = jax.jit(functools.partial(cnn_mnist_forward, tb=128))
    out = jax.block_until_ready(fwd(x, prep))

    assert out.shape == (2, 10) and out.dtype == jnp.float32
    assert bool(jnp.all(jnp.isfinite(out)))
    # log_softmax rows must normalize
    assert bool(jnp.all(jnp.abs(jnp.sum(jnp.exp(out), axis=1) - 1.0) < 1e-3))
    print("KERNEL_OK")
</pallas_src>

<mosaic_0001>
module attributes {stable_mosaic.version = 11 : i64} {
  func.func @_cnn_kernel(%arg0: i32, %arg1: memref<8x28x28xf32, #tpu.memory_space<vmem>>, %arg2: memref<140x256xbf16, #tpu.memory_space<vmem>>, %arg3: memref<1x128xf32, #tpu.memory_space<vmem>>, %arg4: memref<640x256xbf16, #tpu.memory_space<vmem>>, %arg5: memref<1x128xf32, #tpu.memory_space<vmem>>, %arg6: memref<512x64xbf16, #tpu.memory_space<vmem>>, %arg7: memref<1x64xf32, #tpu.memory_space<vmem>>, %arg8: memref<64x128xbf16, #tpu.memory_space<vmem>>, %arg9: memref<1x128xf32, #tpu.memory_space<vmem>>, %arg10: memref<8x128xf32, #tpu.memory_space<vmem>>, %arg11: memref<8x24x128xf32, #tpu.memory_space<vmem>>, %arg12: memref<8x8x128xf32, #tpu.memory_space<vmem>>) attributes {dimension_semantics = [#tpu.dimension_semantics<parallel>], iteration_bounds = array<i64: 1>, scalar_prefetch = 0 : i64, scratch_operands = 2 : i64, tpu.core_type = #tpu.core_type<tc>, window_params = [{transform_indices = @transform_0, window_bounds = array<i64: 8, 28, 28>}, {pipeline_mode = #tpu.pipeline_mode<synchronous>, transform_indices = @transform_1, window_bounds = array<i64: 140, 256>}, {pipeline_mode = #tpu.pipeline_mode<synchronous>, transform_indices = @transform_2, window_bounds = array<i64: 1, 128>}, {pipeline_mode = #tpu.pipeline_mode<synchronous>, transform_indices = @transform_3, window_bounds = array<i64: 640, 256>}, {pipeline_mode = #tpu.pipeline_mode<synchronous>, transform_indices = @transform_4, window_bounds = array<i64: 1, 128>}, {pipeline_mode = #tpu.pipeline_mode<synchronous>, transform_indices = @transform_5, window_bounds = array<i64: 512, 64>}, {pipeline_mode = #tpu.pipeline_mode<synchronous>, transform_indices = @transform_6, window_bounds = array<i64: 1, 64>}, {pipeline_mode = #tpu.pipeline_mode<synchronous>, transform_indices = @transform_7, window_bounds = array<i64: 64, 128>}, {pipeline_mode = #tpu.pipeline_mode<synchronous>, transform_indices = @transform_8, window_bounds = array<i64: 1, 128>}, {transform_indices = @transform_9, window_bounds = array<i64: 8, 128>}]} {
    %c0 = arith.constant 0 : index
    %c0_0 = arith.constant 0 : index
    %c0_1 = arith.constant 0 : index
    %0 = vector.load %arg1[%c0, %c0_0, %c0_1] : memref<8x28x28xf32, #tpu.memory_space<vmem>>, vector<8x28x28xf32>
    %1 = vector.extract_strided_slice %0 {offsets = [0, 0, 0], sizes = [8, 24, 28], strides = [1, 1, 1]} : vector<8x28x28xf32> to vector<8x24x28xf32>
    %2 = vector.extract_strided_slice %0 {offsets = [0, 1, 0], sizes = [8, 24, 28], strides = [1, 1, 1]} : vector<8x28x28xf32> to vector<8x24x28xf32>
    %3 = vector.extract_strided_slice %0 {offsets = [0, 2, 0], sizes = [8, 24, 28], strides = [1, 1, 1]} : vector<8x28x28xf32> to vector<8x24x28xf32>
    %4 = vector.extract_strided_slice %0 {offsets = [0, 3, 0], sizes = [8, 24, 28], strides = [1, 1, 1]} : vector<8x28x28xf32> to vector<8x24x28xf32>
    %5 = vector.extract_strided_slice %0 {offsets = [0, 4, 0], sizes = [8, 24, 28], strides = [1, 1, 1]} : vector<8x28x28xf32> to vector<8x24x28xf32>
    %6 = tpu.concatenate %1, %2, %3, %4, %5 in 2 : vector<8x24x28xf32>, vector<8x24x28xf32>, vector<8x24x28xf32>, vector<8x24x28xf32>, vector<8x24x28xf32> -> vector<8x24x140xf32>
    %7 = vector.shape_cast %6 : vector<8x24x140xf32> to vector<192x140xf32>
    %8 = arith.truncf %7 : vector<192x140xf32> to vector<192x140xbf16>
    %c0_2 = arith.constant 0 : index
    %c0_3 = arith.constant 0 : index
    %9 = vector.load %arg2[%c0_2, %c0_3] : memref<140x256xbf16, #tpu.memory_space<vmem>>, vector<140x256xbf16>
    %cst = arith.constant dense<0.000000e+00> : vector<192x256xf32>
    %10 = tpu.matmul %8, %9, %cst {dimension_numbers = #tpu.dot_dimension_numbers<[1], [0], [0], [1], [0, 0, 1, 1], [], []>} : vector<192x140xbf16>, vector<140x256xbf16>, vector<192x256xf32> -> vector<192x256xf32>
    %11 = vector.extract_strided_slice %10 {offsets = [0, 0], sizes = [192, 128], strides = [1, 1]} : vector<192x256xf32> to vector<192x128xf32>
    %12 = vector.extract_strided_slice %10 {offsets = [0, 128], sizes = [192, 128], strides = [1, 1]} : vector<192x256xf32> to vector<192x128xf32>
    %13 = arith.maximumf %11, %12 : vector<192x128xf32>
    %14 = vector.shape_cast %13 : vector<192x128xf32> to vector<8x24x128xf32>
    %c0_4 = arith.constant 0 : index
    %c0_5 = arith.constant 0 : index
    %c0_6 = arith.constant 0 : index
    %15 = vector.load %arg11[%c0_4, %c0_5, %c0_6] : memref<8x24x128xf32, #tpu.memory_space<vmem>>, vector<8x24x128xf32>
    tpu.vector_store %arg11[%c0_4, %c0_5, %c0_6], %14 {strides = array<i32>} : memref<8x24x128xf32, #tpu.memory_space<vmem>>, vector<8x24x128xf32>,
    %c0_7 = arith.constant 0 : index
    %c0_8 = arith.constant 0 : index
    %c0_9 = arith.constant 0 : index
    %16 = tpu.strided_load %arg11[%c0_7, %c0_8, %c0_9] {strides = array<i32: 1, 2, 1>} : memref<8x24x128xf32, #tpu.memory_space<vmem>>, vector<8x12x128xf32>
    %c0_10 = arith.constant 0 : index
    %c1 = arith.constant 1 : index
    %c0_11 = arith.constant 0 : index
    %17 = tpu.strided_load %arg11[%c0_10, %c1, %c0_11] {strides = array<i32: 1, 2, 1>} : memref<8x24x128xf32, #tpu.memory_space<vmem>>, vector<8x12x128xf32>
    %18 = arith.maximumf %16, %17 : vector<8x12x128xf32>
    %c0_12 = arith.constant 0 : index
    %c0_13 = arith.constant 0 : index
    %19 = vector.load %arg3[%c0_12, %c0_13] : memref<1x128xf32, #tpu.memory_space<vmem>>, vector<1x128xf32>
    %20 = vector.shape_cast %19 : vector<1x128xf32> to vector<1x1x128xf32>
    %21 = vector.broadcast %20 : vector<1x1x128xf32> to vector<8x12x128xf32>
    %22 = arith.addf %18, %21 : vector<8x12x128xf32>
    %cst_14 = arith.constant 0.000000e+00 : f32
    %23 = vector.broadcast %cst_14 : f32 to vector<8x12x128xf32>
    %24 = arith.maximumf %22, %23 : vector<8x12x128xf32>
    %25 = arith.truncf %24 : vector<8x12x128xf32> to vector<8x12x128xbf16>
    %26 = vector.extract_strided_slice %25 {offsets = [0, 0, 0], sizes = [8, 8, 128], strides = [1, 1, 1]} : vector<8x12x128xbf16> to vector<8x8x128xbf16>
    %27 = vector.extract_strided_slice %25 {offsets = [0, 1, 0], sizes = [8, 8, 128], strides = [1, 1, 1]} : vector<8x12x128xbf16> to vector<8x8x128xbf16>
    %28 = vector.extract_strided_slice %25 {offsets = [0, 2, 0], sizes = [8, 8, 128], strides = [1, 1, 1]} : vector<8x12x128xbf16> to vector<8x8x128xbf16>
    %29 = vector.extract_strided_slice %25 {offsets = [0, 3, 0], sizes = [8, 8, 128], strides = [1, 1, 1]} : vector<8x12x128xbf16> to vector<8x8x128xbf16>
    %30 = vector.extract_strided_slice %25 {offsets = [0, 4, 0], sizes = [8, 8, 128], strides = [1, 1, 1]} : vector<8x12x128xbf16> to vector<8x8x128xbf16>
    %31 = tpu.concatenate %26, %27, %28, %29, %30 in 2 : vector<8x8x128xbf16>, vector<8x8x128xbf16>, vector<8x8x128xbf16>, vector<8x8x128xbf16>, vector<8x8x128xbf16> -> vector<8x8x640xbf16>
    %32 = vector.shape_cast %31 : vector<8x8x640xbf16> to vector<64x640xbf16>
    %c0_15 = arith.constant 0 : index
    %c0_16 = arith.constant 0 : index
    %33 = vector.load %arg4[%c0_15, %c0_16] : memref<640x256xbf16, #tpu.memory_space<vmem>>, vector<640x256xbf16>
    %cst_17 = arith.constant dense<0.000000e+00> : vector<64x256xf32>
    %34 = tpu.matmul %32, %33, %cst_17 {dimension_numbers = #tpu.dot_dimension_numbers<[1], [0], [0], [1], [0, 0, 1, 1], [], []>} : vector<64x640xbf16>, vector<640x256xbf16>, vector<64x256xf32> -> vector<64x256xf32>
    %35 = vector.extract_strided_slice %34 {offsets = [0, 0], sizes = [64, 128], strides = [1, 1]} : vector<64x256xf32> to vector<64x128xf32>
    %36 = vector.extract_strided_slice %34 {offsets = [0, 128], sizes = [64, 128], strides = [1, 1]} : vector<64x256xf32> to vector<64x128xf32>
    %37 = arith.maximumf %35, %36 : vector<64x128xf32>
    %38 = vector.shape_cast %37 : vector<64x128xf32> to vector<8x8x128xf32>
    %c0_18 = arith.constant 0 : index
    %c0_19 = arith.constant 0 : index
    %c0_20 = arith.constant 0 : index
    %39 = vector.load %arg12[%c0_18, %c0_19, %c0_20] : memref<8x8x128xf32, #tpu.memory_space<vmem>>, vector<8x8x128xf32>
    tpu.vector_store %arg12[%c0_18, %c0_19, %c0_20], %38 {strides = array<i32>} : memref<8x8x128xf32, #tpu.memory_space<vmem>>, vector<8x8x128xf32>,
    %c0_21 = arith.constant 0 : index
    %c0_22 = arith.constant 0 : index
    %c0_23 = arith.constant 0 : index
    %40 = tpu.strided_load %arg12[%c0_21, %c0_22, %c0_23] {strides = array<i32: 1, 2, 1>} : memref<8x8x128xf32, #tpu.memory_space<vmem>>, vector<8x4x128xf32>
    %c0_24 = arith.constant 0 : index
    %c1_25 = arith.constant 1 : index
    %c0_26 = arith.constant 0 : index
    %41 = tpu.strided_load %arg12[%c0_24, %c1_25, %c0_26] {strides = array<i32: 1, 2, 1>} : memref<8x8x128xf32, #tpu.memory_space<vmem>>, vector<8x4x128xf32>
    %42 = arith.maximumf %40, %41 : vector<8x4x128xf32>
    %c0_27 = arith.constant 0 : index
    %c0_28 = arith.constant 0 : index
    %43 = vector.load %arg5[%c0_27, %c0_28] : memref<1x128xf32, #tpu.memory_space<vmem>>, vector<1x128xf32>
    %44 = vector.shape_cast %43 : vector<1x128xf32> to vector<1x1x128xf32>
    %45 = vector.broadcast %44 : vector<1x1x128xf32> to vector<8x4x128xf32>
    %46 = arith.addf %42, %45 : vector<8x4x128xf32>
    %cst_29 = arith.constant 0.000000e+00 : f32
    %47 = vector.broadcast %cst_29 : f32 to vector<8x4x128xf32>
    %48 = arith.maximumf %46, %47 : vector<8x4x128xf32>
    %49 = arith.truncf %48 : vector<8x4x128xf32> to vector<8x4x128xbf16>
    %50 = vector.extract_strided_slice %49 {offsets = [0, 0, 0], sizes = [8, 1, 128], strides = [1, 1, 1]} : vector<8x4x128xbf16> to vector<8x1x128xbf16>
    %51 = vector.shape_cast %50 : vector<8x1x128xbf16> to vector<8x128xbf16>
    %52 = vector.extract_strided_slice %49 {offsets = [0, 1, 0], sizes = [8, 1, 128], strides = [1, 1, 1]} : vector<8x4x128xbf16> to vector<8x1x128xbf16>
    %53 = vector.shape_cast %52 : vector<8x1x128xbf16> to vector<8x128xbf16>
    %54 = vector.extract_strided_slice %49 {offsets = [0, 2, 0], sizes = [8, 1, 128], strides = [1, 1, 1]} : vector<8x4x128xbf16> to vector<8x1x128xbf16>
    %55 = vector.shape_cast %54 : vector<8x1x128xbf16> to vector<8x128xbf16>
    %56 = vector.extract_strided_slice %49 {offsets = [0, 3, 0], sizes = [8, 1, 128], strides = [1, 1, 1]} : vector<8x4x128xbf16> to vector<8x1x128xbf16>
    %57 = vector.shape_cast %56 : vector<8x1x128xbf16> to vector<8x128xbf16>
    %58 = tpu.concatenate %51, %53, %55, %57 in 1 : vector<8x128xbf16>, vector<8x128xbf16>, vector<8x128xbf16>, vector<8x128xbf16> -> vector<8x512xbf16>
    %c0_30 = arith.constant 0 : index
    %c0_31 = arith.constant 0 : index
    %59 = vector.load %arg6[%c0_30, %c0_31] : memref<512x64xbf16, #tpu.memory_space<vmem>>, vector<512x64xbf16>
    %cst_32 = arith.constant dense<0.000000e+00> : vector<8x64xf32>
    %60 = tpu.matmul %58, %59, %cst_32 {dimension_numbers = #tpu.dot_dimension_numbers<[1], [0], [0], [1], [0, 0, 1, 1], [], []>} : vector<8x512xbf16>, vector<512x64xbf16>, vector<8x64xf32> -> vector<8x64xf32>
    %c0_33 = arith.constant 0 : index
    %c0_34 = arith.constant 0 : index
    %61 = vector.load %arg7[%c0_33, %c0_34] : memref<1x64xf32, #tpu.memory_space<vmem>>, vector<1x64xf32>
    %62 = vector.broadcast %61 : vector<1x64xf32> to vector<8x64xf32>
    %63 = arith.addf %60, %62 : vector<8x64xf32>
    %cst_35 = arith.constant 0.000000e+00 : f32
    %64 = vector.broadcast %cst_35 : f32 to vector<8x64xf32>
    %65 = arith.maximumf %63, %64 : vector<8x64xf32>
    %66 = arith.truncf %65 : vector<8x64xf32> to vector<8x64xbf16>
    %c0_36 = arith.constant 0 : index
    %c0_37 = arith.constant 0 : index
    %67 = vector.load %arg8[%c0_36, %c0_37] : memref<64x128xbf16, #tpu.memory_space<vmem>>, vector<64x128xbf16>
    %cst_38 = arith.constant dense<0.000000e+00> : vector<8x128xf32>
    %68 = tpu.matmul %66, %67, %cst_38 {dimension_numbers = #tpu.dot_dimension_numbers<[1], [0], [0], [1], [0, 0, 1, 1], [], []>} : vector<8x64xbf16>, vector<64x128xbf16>, vector<8x128xf32> -> vector<8x128xf32>
    %c0_39 = arith.constant 0 : index
    %c0_40 = arith.constant 0 : index
    %69 = vector.load %arg9[%c0_39, %c0_40] : memref<1x128xf32, #tpu.memory_space<vmem>>, vector<1x128xf32>
    %70 = vector.broadcast %69 : vector<1x128xf32> to vector<8x128xf32>
    %71 = arith.addf %68, %70 : vector<8x128xf32>
    %cst_41 = arith.constant dense<0xFF800000> : vector<8xf32>
    %72 = vector.multi_reduction <maximumf>, %71, %cst_41 [1] : vector<8x128xf32> to vector<8xf32>
    %73 = vector.shape_cast %72 : vector<8xf32> to vector<8x1xf32>
    %74 = vector.broadcast %73 : vector<8x1xf32> to vector<8x128xf32>
    %75 = arith.subf %71, %74 : vector<8x128xf32>
    %76 = math.exp %75 : vector<8x128xf32>
    %cst_42 = arith.constant dense<0.000000e+00> : vector<8xf32>
    %77 = vector.multi_reduction <add>, %76, %cst_42 [1] : vector<8x128xf32> to vector<8xf32>
    %78 = vector.shape_cast %77 : vector<8xf32> to vector<8x1xf32>
    %79 = math.log %78 : vector<8x1xf32>
    %80 = vector.broadcast %79 : vector<8x1xf32> to vector<8x128xf32>
    %81 = arith.subf %75, %80 : vector<8x128xf32>
    %c0_43 = arith.constant 0 : index
    %c0_44 = arith.constant 0 : index
    %82 = vector.load %arg10[%c0_43, %c0_44] : memref<8x128xf32, #tpu.memory_space<vmem>>, vector<8x128xf32>
    tpu.vector_store %arg10[%c0_43, %c0_44], %81 {strides = array<i32>} : memref<8x128xf32, #tpu.memory_space<vmem>>, vector<8x128xf32>,
    return
  }
  func.func @transform_0(%arg0: i32) -> (i32, i32, i32) {
    %c0_i32 = arith.constant 0 : i32
    %c0_i32_0 = arith.constant 0 : i32
    %c0_i32_1 = arith.constant 0 : i32
    return %arg0, %c0_i32, %c0_i32_0 : i32, i32, i32
  }
  func.func @transform_1(%arg0: i32) -> (i32, i32) {
    %c0_i32 = arith.constant 0 : i32
    %c0_i32_0 = arith.constant 0 : i32
    %c0_i32_1 = arith.constant 0 : i32
    return %c0_i32, %c0_i32_0 : i32, i32
  }
  func.func @transform_2(%arg0: i32) -> (i32, i32) {
    %c0_i32 = arith.constant 0 : i32
    %c0_i32_0 = arith.constant 0 : i32
    %c0_i32_1 = arith.constant 0 : i32
    return %c0_i32, %c0_i32_0 : i32, i32
  }
  func.func @transform_3(%arg0: i32) -> (i32, i32) {
    %c0_i32 = arith.constant 0 : i32
    %c0_i32_0 = arith.constant 0 : i32
    %c0_i32_1 = arith.constant 0 : i32
    return %c0_i32, %c0_i32_0 : i32, i32
  }
  func.func @transform_4(%arg0: i32) -> (i32, i32) {
    %c0_i32 = arith.constant 0 : i32
    %c0_i32_0 = arith.constant 0 : i32
    %c0_i32_1 = arith.constant 0 : i32
    return %c0_i32, %c0_i32_0 : i32, i32
  }
  func.func @transform_5(%arg0: i32) -> (i32, i32) {
    %c0_i32 = arith.constant 0 : i32
    %c0_i32_0 = arith.constant 0 : i32
    %c0_i32_1 = arith.constant 0 : i32
    return %c0_i32, %c0_i32_0 : i32, i32
  }
  func.func @transform_6(%arg0: i32) -> (i32, i32) {
    %c0_i32 = arith.constant 0 : i32
    %c0_i32_0 = arith.constant 0 : i32
    %c0_i32_1 = arith.constant 0 : i32
    return %c0_i32, %c0_i32_0 : i32, i32
  }
  func.func @transform_7(%arg0: i32) -> (i32, i32) {
    %c0_i32 = arith.constant 0 : i32
    %c0_i32_0 = arith.constant 0 : i32
    %c0_i32_1 = arith.constant 0 : i32
    return %c0_i32, %c0_i32_0 : i32, i32
  }
  func.func @transform_8(%arg0: i32) -> (i32, i32) {
    %c0_i32 = arith.constant 0 : i32
    %c0_i32_0 = arith.constant 0 : i32
    %c0_i32_1 = arith.constant 0 : i32
    return %c0_i32, %c0_i32_0 : i32, i32
  }
  func.func @transform_9(%arg0: i32) -> (i32, i32) {
    %c0_i32 = arith.constant 0 : i32
    %c0_i32_0 = arith.constant 0 : i32
    return %arg0, %c0_i32 : i32, i32
  }
}

</mosaic_0001>

<llo_original>
// kernel: cnn_mnist_forward.1
$region0: #{cnn_mnist_forward.1}
  #allocation0 [shape = 'u32[]', space=smem, size = 0x4, offset = 0x4, fixed_abs, tag = 'smem constant byte address 0x4 - core index']
  #allocation1 [shape = 'u32[144,128]{1,0:T(1,128)}', space=vmem, size = 0x12000, scoped, tag = 'internal scratch']
  #allocation2 [shape = 'f32[8,24,128]{2,1,0:T(8,128)}', space=vmem, size = 0x18000, scoped, tag = 'scratch operand']
  #allocation3 [shape = 'f32[8,8,128]{2,1,0:T(8,128)}', space=vmem, size = 0x8000, scoped, tag = 'scratch operand']
  %s0 = inlined_call_operand.vmem [shape: f32[8,28,28], index: 0, kind: input, shape index: {}]
  %s1 = inlined_call_operand.vmem [shape: bf16[140,256], index: 1, kind: input, shape index: {}]
  %s2 = inlined_call_operand.vmem [shape: f32[1,128], index: 2, kind: input, shape index: {}]
  %s3 = inlined_call_operand.vmem [shape: bf16[640,256], index: 3, kind: input, shape index: {}]
  %s4 = inlined_call_operand.vmem [shape: f32[1,128], index: 4, kind: input, shape index: {}]
  %s5 = inlined_call_operand.vmem [shape: bf16[512,64], index: 5, kind: input, shape index: {}]
  %s6 = inlined_call_operand.vmem [shape: f32[1,64], index: 6, kind: input, shape index: {}]
  %s7 = inlined_call_operand.vmem [shape: bf16[64,128], index: 7, kind: input, shape index: {}]
  %s8 = inlined_call_operand.vmem [shape: f32[1,128], index: 8, kind: input, shape index: {}]
  %s9 = inlined_call_operand.vmem [shape: f32[8,128], index: 9, kind: output, shape index: {}]
  %s10 = sld [smem:[#allocation0]]
  $region46: #{cnn_mnist_forward.1} parent=0
    _
  %s12 = ssub.s32 1, %s10
  %s13 = scalar_select 0, %s12, %s10
  // Predicated region
  $region2: #{cnn_mnist_forward.1} parent=0 // pred_check
    _
  $region3: #{cnn_mnist_forward.1} parent=0 // pred_check_branch
    %15 = sbr.rel (0) target = $region5
  $region4: #{cnn_mnist_forward.1} parent=0 // pred_region
    _
  $region5: #{cnn_mnist_forward.1} parent=0 // pred_fallthru
    _
  // Predicated region
  $region6: #{cnn_mnist_forward.1} parent=0 // pred_check
    _
  $region7: #{cnn_mnist_forward.1} parent=0 // pred_check_branch
    %17 = sbr.rel (0) target = $region9
  $region8: #{cnn_mnist_forward.1} parent=0 // pred_region
    _
  $region9: #{cnn_mnist_forward.1} parent=0 // pred_fallthru
    _
  // Predicated region
  $region10: #{cnn_mnist_forward.1} parent=0 // pred_check
    _
  $region11: #{cnn_mnist_forward.1} parent=0 // pred_check_branch
    %19 = sbr.rel (0) target = $region13
  $region12: #{cnn_mnist_forward.1} parent=0 // pred_region
    _
  $region13: #{cnn_mnist_forward.1} parent=0 // pred_fallthru
    _
  // Predicated region
  $region14: #{cnn_mnist_forward.1} parent=0 // pred_check
    _
  $region15: #{cnn_mnist_forward.1} parent=0 // pred_check_branch
    %21 = sbr.rel (0) target = $region17
  $region16: #{cnn_mnist_forward.1} parent=0 // pred_region
    _
  $region17: #{cnn_mnist_forward.1} parent=0 // pred_fallthru
    _
  // Predicated region
  $region18: #{cnn_mnist_forward.1} parent=0 // pred_check
    _
  $region19: #{cnn_mnist_forward.1} parent=0 // pred_check_branch
    %23 = sbr.rel (0) target = $region21
  $region20: #{cnn_mnist_forward.1} parent=0 // pred_region
    _
  $region21: #{cnn_mnist_forward.1} parent=0 // pred_fallthru
    _
  // Predicated region
  $region22: #{cnn_mnist_forward.1} parent=0 // pred_check
    _
  $region23: #{cnn_mnist_forward.1} parent=0 // pred_check_branch
    %25 = sbr.rel (0) target = $region25
  $region24: #{cnn_mnist_forward.1} parent=0 // pred_region
    _
  $region25: #{cnn_mnist_forward.1} parent=0 // pred_fallthru
    _
  // Predicated region
  $region26: #{cnn_mnist_forward.1} parent=0 // pred_check
    _
  $region27: #{cnn_mnist_forward.1} parent=0 // pred_check_branch
    %27 = sbr.rel (0) target = $region29
  $region28: #{cnn_mnist_forward.1} parent=0 // pred_region
    _
  $region29: #{cnn_mnist_forward.1} parent=0 // pred_fallthru
    _
  // Predicated region
  $region30: #{cnn_mnist_forward.1} parent=0 // pred_check
    _
  $region31: #{cnn_mnist_forward.1} parent=0 // pred_check_branch
    %29 = sbr.rel (0) target = $region33
  $region32: #{cnn_mnist_forward.1} parent=0 // pred_region
    _
  $region33: #{cnn_mnist_forward.1} parent=0 // pred_fallthru
    _
  // Predicated region
  $region34: #{cnn_mnist_forward.1} parent=0 // pred_check
    _
  $region35: #{cnn_mnist_forward.1} parent=0 // pred_check_branch
    %31 = sbr.rel (0) target = $region37
  $region36: #{cnn_mnist_forward.1} parent=0 // pred_region
    _
  $region37: #{cnn_mnist_forward.1} parent=0 // pred_fallthru
    _
  %v33 = vld [vmem:[%s0] sm:$0xff]
  %v34 = vld [vmem:[%s0 + $0x8] sm:$0xff]
  %v35 = vld [vmem:[%s0 + $0x10] sm:$0xff]
  %v36 = vld [vmem:[%s0 + $0x18] sm:$0xf]
  %v37 = vld [vmem:[%s0 + $0x20] sm:$0xff]
  %v38 = vld [vmem:[%s0 + $0x28] sm:$0xff]
  %v39 = vld [vmem:[%s0 + $0x30] sm:$0xff]
  %v40 = vld [vmem:[%s0 + $0x38] sm:$0xf]
  %v41 = vld [vmem:[%s0 + $0x40] sm:$0xff]
  %v42 = vld [vmem:[%s0 + $0x48] sm:$0xff]
  %v43 = vld [vmem:[%s0 + $0x50] sm:$0xff]
  %v44 = vld [vmem:[%s0 + $0x58] sm:$0xf]
  %v45 = vld [vmem:[%s0 + $0x60] sm:$0xff]
  %v46 = vld [vmem:[%s0 + $0x68] sm:$0xff]
  %v47 = vld [vmem:[%s0 + $0x70] sm:$0xff]
  %v48 = vld [vmem:[%s0 + $0x78] sm:$0xf]
  %v49 = vld [vmem:[%s0 + $0x80] sm:$0xff]
  %v50 = vld [vmem:[%s0 + $0x88] sm:$0xff]
  %v51 = vld [vmem:[%s0 + $0x90] sm:$0xff]
  %v52 = vld [vmem:[%s0 + $0x98] sm:$0xf]
  %v53 = vld [vmem:[%s0 + $0xa0] sm:$0xff]
  %v54 = vld [vmem:[%s0 + $0xa8] sm:$0xff]
  %v55 = vld [vmem:[%s0 + $0xb0] sm:$0xff]
  %v56 = vld [vmem:[%s0 + $0xb8] sm:$0xf]
  %v57 = vld [vmem:[%s0 + $0xc0] sm:$0xff]
  %v58 = vld [vmem:[%s0 + $0xc8] sm:$0xff]
  %v59 = vld [vmem:[%s0 + $0xd0] sm:$0xff]
  %v60 = vld [vmem:[%s0 + $0xd8] sm:$0xf]
  %v61 = vld [vmem:[%s0 + $0xe0] sm:$0xff]
  %v62 = vld [vmem:[%s0 + $0xe8] sm:$0xff]
  %v63 = vld [vmem:[%s0 + $0xf0] sm:$0xff]
  %v64 = vld [vmem:[%s0 + $0xf8] sm:$0xf]
  %vm97 = vcmask 1046528
  %v98 = vrot.slane %v33, 1
  %v99 = vrot.slane %v34, 1
  %v100 = vsel %vm97, %v98, %v99
  %v101 = vrot.slane %v35, 1
  %v102 = vsel %vm97, %v99, %v101
  %v103 = vrot.slane %v36, 1
  %v104 = vsel %vm97, %v101, %v103
  %v105 = vrot.slane %v37, 1
  %v106 = vrot.slane %v38, 1
  %v107 = vsel %vm97, %v105, %v106
  %v108 = vrot.slane %v39, 1
  %v109 = vsel %vm97, %v106, %v108
  %v110 = vrot.slane %v40, 1
  %v111 = vsel %vm97, %v108, %v110
  %v112 = vrot.slane %v41, 1
  %v113 = vrot.slane %v42, 1
  %v114 = vsel %vm97, %v112, %v113
  %v115 = vrot.slane %v43, 1
  %v116 = vsel %vm97, %v113, %v115
  %v117 = vrot.slane %v44, 1
  %v118 = vsel %vm97, %v115, %v117
  %v119 = vrot.slane %v45, 1
  %v120 = vrot.slane %v46, 1
  %v121 = vsel %vm97, %v119, %v120
  %v122 = vrot.slane %v47, 1
  %v123 = vsel %vm97, %v120, %v122
  %v124 = vrot.slane %v48, 1
  %v125 = vsel %vm97, %v122, %v124
  %v126 = vrot.slane %v49, 1
  %v127 = vrot.slane %v50, 1
  %v128 = vsel %vm97, %v126, %v127
  %v129 = vrot.slane %v51, 1
  %v130 = vsel %vm97, %v127, %v129
  %v131 = vrot.slane %v52, 1
  %v132 = vsel %vm97, %v129, %v131
  %v133 = vrot.slane %v53, 1
  %v134 = vrot.slane %v54, 1
  %v135 = vsel %vm97, %v133, %v134
  %v136 = vrot.slane %v55, 1
  %v137 = vsel %vm97, %v134, %v136
  %v138 = vrot.slane %v56, 1
  %v139 = vsel %vm97, %v136, %v138
  %v140 = vrot.slane %v57, 1
  %v141 = vrot.slane %v58, 1
  %v142 = vsel %vm97, %v140, %v141
  %v143 = vrot.slane %v59, 1
  %v144 = vsel %vm97, %v141, %v143
  %v145 = vrot.slane %v60, 1
  %v146 = vsel %vm97, %v143, %v145
  %v147 = vrot.slane %v61, 1
  %v148 = vrot.slane %v62, 1
  %v149 = vsel %vm97, %v147, %v148
  %v150 = vrot.slane %v63, 1
  %v151 = vsel %vm97, %v148, %v150
  %v152 = vrot.slane %v64, 1
  %v153 = vsel %vm97, %v150, %v152
  %154 = vrot.lane.b32.xlu0 %v100, 28
  %v155 = vpop.permute.xlu0 %154
  %156 = vrot.lane.b32.xlu0 %v102, 28
  %v157 = vpop.permute.xlu0 %156
  %158 = vrot.lane.b32.xlu0 %v104, 28
  %v159 = vpop.permute.xlu0 %158
  %160 = vrot.lane.b32.xlu0 %v107, 28
  %v161 = vpop.permute.xlu0 %160
  %162 = vrot.lane.b32.xlu0 %v109, 28
  %v163 = vpop.permute.xlu0 %162
  %164 = vrot.lane.b32.xlu0 %v111, 28
  %v165 = vpop.permute.xlu0 %164
  %166 = vrot.lane.b32.xlu0 %v114, 28
  %v167 = vpop.permute.xlu0 %166
  %168 = vrot.lane.b32.xlu0 %v116, 28
  %v169 = vpop.permute.xlu0 %168
  %170 = vrot.lane.b32.xlu0 %v118, 28
  %v171 = vpop.permute.xlu0 %170
  %172 = vrot.lane.b32.xlu0 %v121, 28
  %v173 = vpop.permute.xlu0 %172
  %174 = vrot.lane.b32.xlu0 %v123, 28
  %v175 = vpop.permute.xlu0 %174
  %176 = vrot.lane.b32.xlu0 %v125, 28
  %v177 = vpop.permute.xlu0 %176
  %178 = vrot.lane.b32.xlu0 %v128, 28
  %v179 = vpop.permute.xlu0 %178
  %180 = vrot.lane.b32.xlu0 %v130, 28
  %v181 = vpop.permute.xlu0 %180
  %182 = vrot.lane.b32.xlu0 %v132, 28
  %v183 = vpop.permute.xlu0 %182
  %184 = vrot.lane.b32.xlu0 %v135, 28
  %v185 = vpop.permute.xlu0 %184
  %186 = vrot.lane.b32.xlu0 %v137, 28
  %v187 = vpop.permute.xlu0 %186
  %188 = vrot.lane.b32.xlu0 %v139, 28
  %v189 = vpop.permute.xlu0 %188
  %190 = vrot.lane.b32.xlu0 %v142, 28
  %v191 = vpop.permute.xlu0 %190
  %192 = vrot.lane.b32.xlu0 %v144, 28
  %v193 = vpop.permute.xlu0 %192
  %194 = vrot.lane.b32.xlu0 %v146, 28
  %v195 = vpop.permute.xlu0 %194
  %196 = vrot.lane.b32.xlu0 %v149, 28
  %v197 = vpop.permute.xlu0 %196
  %198 = vrot.lane.b32.xlu0 %v151, 28
  %v199 = vpop.permute.xlu0 %198
  %200 = vrot.lane.b32.xlu0 %v153, 28
  %v201 = vpop.permute.xlu0 %200
  %vm226 = vcmask 1045504
  %v227 = vrot.slane %v33, 2
  %v228 = vrot.slane %v34, 2
  %v229 = vsel %vm226, %v227, %v228
  %v230 = vrot.slane %v35, 2
  %v231 = vsel %vm226, %v228, %v230
  %v232 = vrot.slane %v36, 2
  %v233 = vsel %vm226, %v230, %v232
  %v234 = vrot.slane %v37, 2
  %v235 = vrot.slane %v38, 2
  %v236 = vsel %vm226, %v234, %v235
  %v237 = vrot.slane %v39, 2
  %v238 = vsel %vm226, %v235, %v237
  %v239 = vrot.slane %v40, 2
  %v240 = vsel %vm226, %v237, %v239
  %v241 = vrot.slane %v41, 2
  %v242 = vrot.slane %v42, 2
  %v243 = vsel %vm226, %v241, %v242
  %v244 = vrot.slane %v43, 2
  %v245 = vsel %vm226, %v242, %v244
  %v246 = vrot.slane %v44, 2
  %v247 = vsel %vm226, %v244, %v246
  %v248 = vrot.slane %v45, 2
  %v249 = vrot.slane %v46, 2
  %v250 = vsel %vm226, %v248, %v249
  %v251 = vrot.slane %v47, 2
  %v252 = vsel %vm226, %v249, %v251
  %v253 = vrot.slane %v48, 2
  %v254 = vsel %vm226, %v251, %v253
  %v255 = vrot.slane %v49, 2
  %v256 = vrot.slane %v50, 2
  %v257 = vsel %vm226, %v255, %v256
  %v258 = vrot.slane %v51, 2
  %v259 = vsel %vm226, %v256, %v258
  %v260 = vrot.slane %v52, 2
  %v261 = vsel %vm226, %v258, %v260
  %v262 = vrot.slane %v53, 2
  %v263 = vrot.slane %v54, 2
  %v264 = vsel %vm226, %v262, %v263
  %v265 = vrot.slane %v55, 2
  %v266 = vsel %vm226, %v263, %v265
  %v267 = vrot.slane %v56, 2
  %v268 = vsel %vm226, %v265, %v267
  %v269 = vrot.slane %v57, 2
  %v270 = vrot.slane %v58, 2
  %v271 = vsel %vm226, %v269, %v270
  %v272 = vrot.slane %v59, 2
  %v273 = vsel %vm226, %v270, %v272
  %v274 = vrot.slane %v60, 2
  %v275 = vsel %vm226, %v272, %v274
  %v276 = vrot.slane %v61, 2
  %v277 = vrot.slane %v62, 2
  %v278 = vsel %vm226, %v276, %v277
  %v279 = vrot.slane %v63, 2
  %v280 = vsel %vm226, %v277, %v279
  %v281 = vrot.slane %v64, 2
  %v282 = vsel %vm226, %v279, %v281
  %283 = vrot.lane.b32.xlu0 %v229, 56
  %v284 = vpop.permute.xlu0 %283
  %285 = vrot.lane.b32.xlu0 %v231, 56
  %v286 = vpop.permute.xlu0 %285
  %287 = vrot.lane.b32.xlu0 %v233, 56
  %v288 = vpop.permute.xlu0 %287
  %289 = vrot.lane.b32.xlu0 %v236, 56
  %v290 = vpop.permute.xlu0 %289
  %291 = vrot.lane.b32.xlu0 %v238, 56
  %v292 = vpop.permute.xlu0 %291
  %293 = vrot.lane.b32.xlu0 %v240, 56
  %v294 = vpop.permute.xlu0 %293
  %295 = vrot.lane.b32.xlu0 %v243, 56
  %v296 = vpop.permute.xlu0 %295
  %297 = vrot.lane.b32.xlu0 %v245, 56
  %v298 = vpop.permute.xlu0 %297
  %299 = vrot.lane.b32.xlu0 %v247, 56
  %v300 = vpop.permute.xlu0 %299
  %301 = vrot.lane.b32.xlu0 %v250, 56
  %v302 = vpop.permute.xlu0 %301
  %303 = vrot.lane.b32.xlu0 %v252, 56
  %v304 = vpop.permute.xlu0 %303
  %305 = vrot.lane.b32.xlu0 %v254, 56
  %v306 = vpop.permute.xlu0 %305
  %307 = vrot.lane.b32.xlu0 %v257, 56
  %v308 = vpop.permute.xlu0 %307
  %309 = vrot.lane.b32.xlu0 %v259, 56
  %v310 = vpop.permute.xlu0 %309
  %311 = vrot.lane.b32.xlu0 %v261, 56
  %v312 = vpop.permute.xlu0 %311
  %313 = vrot.lane.b32.xlu0 %v264, 56
  %v314 = vpop.permute.xlu0 %313
  %315 = vrot.lane.b32.xlu0 %v266, 56
  %v316 = vpop.permute.xlu0 %315
  %317 = vrot.lane.b32.xlu0 %v268, 56
  %v318 = vpop.permute.xlu0 %317
  %319 = vrot.lane.b32.xlu0 %v271, 56
  %v320 = vpop.permute.xlu0 %319
  %321 = vrot.lane.b32.xlu0 %v273, 56
  %v322 = vpop.permute.xlu0 %321
  %323 = vrot.lane.b32.xlu0 %v275, 56
  %v324 = vpop.permute.xlu0 %323
  %325 = vrot.lane.b32.xlu0 %v278, 56
  %v326 = vpop.permute.xlu0 %325
  %327 = vrot.lane.b32.xlu0 %v280, 56
  %v328 = vpop.permute.xlu0 %327
  %329 = vrot.lane.b32.xlu0 %v282, 56
  %v330 = vpop.permute.xlu0 %329
  %vm355 = vcmask 1044480
  %v356 = vrot.slane %v33, 3
  %v357 = vrot.slane %v34, 3
  %v358 = vsel %vm355, %v356, %v357
  %v359 = vrot.slane %v35, 3
  %v360 = vsel %vm355, %v357, %v359
  %v361 = vrot.slane %v36, 3
  %v362 = vsel %vm355, %v359, %v361
  %v363 = vrot.slane %v37, 3
  %v364 = vrot.slane %v38, 3
  %v365 = vsel %vm355, %v363, %v364
  %v366 = vrot.slane %v39, 3
  %v367 = vsel %vm355, %v364, %v366
  %v368 = vrot.slane %v40, 3
  %v369 = vsel %vm355, %v366, %v368
  %v370 = vrot.slane %v41, 3
  %v371 = vrot.slane %v42, 3
  %v372 = vsel %vm355, %v370, %v371
  %v373 = vrot.slane %v43, 3
  %v374 = vsel %vm355, %v371, %v373
  %v375 = vrot.slane %v44, 3
  %v376 = vsel %vm355, %v373, %v375
  %v377 = vrot.slane %v45, 3
  %v378 = vrot.slane %v46, 3
  %v379 = vsel %vm355, %v377, %v378
  %v380 = vrot.slane %v47, 3
  %v381 = vsel %vm355, %v378, %v380
  %v382 = vrot.slane %v48, 3
  %v383 = vsel %vm355, %v380, %v382
  %v384 = vrot.slane %v49, 3
  %v385 = vrot.slane %v50, 3
  %v386 = vsel %vm355, %v384, %v385
  %v387 = vrot.slane %v51, 3
  %v388 = vsel %vm355, %v385, %v387
  %v389 = vrot.slane %v52, 3
  %v390 = vsel %vm355, %v387, %v389
  %v391 = vrot.slane %v53, 3
  %v392 = vrot.slane %v54, 3
  %v393 = vsel %vm355, %v391, %v392
  %v394 = vrot.slane %v55, 3
  %v395 = vsel %vm355, %v392, %v394
  %v396 = vrot.slane %v56, 3
  %v397 = vsel %vm355, %v394, %v396
  %v398 = vrot.slane %v57, 3
  %v399 = vrot.slane %v58, 3
  %v400 = vsel %vm355, %v398, %v399
  %v401 = vrot.slane %v59, 3
  %v402 = vsel %vm355, %v399, %v401
  %v403 = vrot.slane %v60, 3
  %v404 = vsel %vm355, %v401, %v403
  %v405 = vrot.slane %v61, 3
  %v406 = vrot.slane %v62, 3
  %v407 = vsel %vm355, %v405, %v406
  %v408 = vrot.slane %v63, 3
  %v409 = vsel %vm355, %v406, %v408
  %v410 = vrot.slane %v64, 3
  %v411 = vsel %vm355, %v408, %v410
  %412 = vrot.lane.b32.xlu0 %v358, 84
  %v413 = vpop.permute.xlu0 %412
  %414 = vrot.lane.b32.xlu0 %v360, 84
  %v415 = vpop.permute.xlu0 %414
  %416 = vrot.lane.b32.xlu0 %v362, 84
  %v417 = vpop.permute.xlu0 %416
  %418 = vrot.lane.b32.xlu0 %v365, 84
  %v419 = vpop.permute.xlu0 %418
  %420 = vrot.lane.b32.xlu0 %v367, 84
  %v421 = vpop.permute.xlu0 %420
  %422 = vrot.lane.b32.xlu0 %v369, 84
  %v423 = vpop.permute.xlu0 %422
  %424 = vrot.lane.b32.xlu0 %v372, 84
  %v425 = vpop.permute.xlu0 %424
  %426 = vrot.lane.b32.xlu0 %v374, 84
  %v427 = vpop.permute.xlu0 %426
  %428 = vrot.lane.b32.xlu0 %v376, 84
  %v429 = vpop.permute.xlu0 %428
  %430 = vrot.lane.b32.xlu0 %v379, 84
  %v431 = vpop.permute.xlu0 %430
  %432 = vrot.lane.b32.xlu0 %v381, 84
  %v433 = vpop.permute.xlu0 %432
  %434 = vrot.lane.b32.xlu0 %v383, 84
  %v435 = vpop.permute.xlu0 %434
  %436 = vrot.lane.b32.xlu0 %v386, 84
  %v437 = vpop.permute.xlu0 %436
  %438 = vrot.lane.b32.xlu0 %v388, 84
  %v439 = vpop.permute.xlu0 %438
  %440 = vrot.lane.b32.xlu0 %v390, 84
  %v441 = vpop.permute.xlu0 %440
  %442 = vrot.lane.b32.xlu0 %v393, 84
  %v443 = vpop.permute.xlu0 %442
  %444 = vrot.lane.b32.xlu0 %v395, 84
  %v445 = vpop.permute.xlu0 %444
  %446 = vrot.lane.b32.xlu0 %v397, 84
  %v447 = vpop.permute.xlu0 %446
  %448 = vrot.lane.b32.xlu0 %v400, 84
  %v449 = vpop.permute.xlu0 %448
  %450 = vrot.lane.b32.xlu0 %v402, 84
  %v451 = vpop.permute.xlu0 %450
  %452 = vrot.lane.b32.xlu0 %v404, 84
  %v453 = vpop.permute.xlu0 %452
  %454 = vrot.lane.b32.xlu0 %v407, 84
  %v455 = vpop.permute.xlu0 %454
  %456 = vrot.lane.b32.xlu0 %v409, 84
  %v457 = vpop.permute.xlu0 %456
  %458 = vrot.lane.b32.xlu0 %v411, 84
  %v459 = vpop.permute.xlu0 %458
  %vm484 = vcmask 1043456
  %v485 = vrot.slane %v33, 4
  %v486 = vrot.slane %v34, 4
  %v487 = vsel %vm484, %v485, %v486
  %v488 = vrot.slane %v35, 4
  %v489 = vsel %vm484, %v486, %v488
  %v490 = vrot.slane %v36, 4
  %v491 = vsel %vm484, %v488, %v490
  %v492 = vrot.slane %v37, 4
  %v493 = vrot.slane %v38, 4
  %v494 = vsel %vm484, %v492, %v493
  %v495 = vrot.slane %v39, 4
  %v496 = vsel %vm484, %v493, %v495
  %v497 = vrot.slane %v40, 4
  %v498 = vsel %vm484, %v495, %v497
  %v499 = vrot.slane %v41, 4
  %v500 = vrot.slane %v42, 4
  %v501 = vsel %vm484, %v499, %v500
  %v502 = vrot.slane %v43, 4
  %v503 = vsel %vm484, %v500, %v502
  %v504 = vrot.slane %v44, 4
  %v505 = vsel %vm484, %v502, %v504
  %v506 = vrot.slane %v45, 4
  %v507 = vrot.slane %v46, 4
  %v508 = vsel %vm484, %v506, %v507
  %v509 = vrot.slane %v47, 4
  %v510 = vsel %vm484, %v507, %v509
  %v511 = vrot.slane %v48, 4
  %v512 = vsel %vm484, %v509, %v511
  %v513 = vrot.slane %v49, 4
  %v514 = vrot.slane %v50, 4
  %v515 = vsel %vm484, %v513, %v514
  %v516 = vrot.slane %v51, 4
  %v517 = vsel %vm484, %v514, %v516
  %v518 = vrot.slane %v52, 4
  %v519 = vsel %vm484, %v516, %v518
  %v520 = vrot.slane %v53, 4
  %v521 = vrot.slane %v54, 4
  %v522 = vsel %vm484, %v520, %v521
  %v523 = vrot.slane %v55, 4
  %v524 = vsel %vm484, %v521, %v523
  %v525 = vrot.slane %v56, 4
  %v526 = vsel %vm484, %v523, %v525
  %v527 = vrot.slane %v57, 4
  %v528 = vrot.slane %v58, 4
  %v529 = vsel %vm484, %v527, %v528
  %v530 = vrot.slane %v59, 4
  %v531 = vsel %vm484, %v528, %v530
  %v532 = vrot.slane %v60, 4
  %v533 = vsel %vm484, %v530, %v532
  %v534 = vrot.slane %v61, 4
  %v535 = vrot.slane %v62, 4
  %v536 = vsel %vm484, %v534, %v535
  %v537 = vrot.slane %v63, 4
  %v538 = vsel %vm484, %v535, %v537
  %v539 = vrot.slane %v64, 4
  %v540 = vsel %vm484, %v537, %v539
  %541 = vrot.lane.b32.xlu0 %v487, 112
  %v542 = vpop.permute.xlu0 %541
  %543 = vrot.lane.b32.xlu0 %v489, 112
  %v544 = vpop.permute.xlu0 %543
  %545 = vrot.lane.b32.xlu0 %v491, 112
  %v546 = vpop.permute.xlu0 %545
  %547 = vrot.lane.b32.xlu0 %v494, 112
  %v548 = vpop.permute.xlu0 %547
  %549 = vrot.lane.b32.xlu0 %v496, 112
  %v550 = vpop.permute.xlu0 %549
  %551 = vrot.lane.b32.xlu0 %v498, 112
  %v552 = vpop.permute.xlu0 %551
  %553 = vrot.lane.b32.xlu0 %v501, 112
  %v554 = vpop.permute.xlu0 %553
  %555 = vrot.lane.b32.xlu0 %v503, 112
  %v556 = vpop.permute.xlu0 %555
  %557 = vrot.lane.b32.xlu0 %v505, 112
  %v558 = vpop.permute.xlu0 %557
  %559 = vrot.lane.b32.xlu0 %v508, 112
  %v560 = vpop.permute.xlu0 %559
  %561 = vrot.lane.b32.xlu0 %v510, 112
  %v562 = vpop.permute.xlu0 %561
  %563 = vrot.lane.b32.xlu0 %v512, 112
  %v564 = vpop.permute.xlu0 %563
  %565 = vrot.lane.b32.xlu0 %v515, 112
  %v566 = vpop.permute.xlu0 %565
  %567 = vrot.lane.b32.xlu0 %v517, 112
  %v568 = vpop.permute.xlu0 %567
  %569 = vrot.lane.b32.xlu0 %v519, 112
  %v570 = vpop.permute.xlu0 %569
  %571 = vrot.lane.b32.xlu0 %v522, 112
  %v572 = vpop.permute.xlu0 %571
  %573 = vrot.lane.b32.xlu0 %v524, 112
  %v574 = vpop.permute.xlu0 %573
  %575 = vrot.lane.b32.xlu0 %v526, 112
  %v576 = vpop.permute.xlu0 %575
  %577 = vrot.lane.b32.xlu0 %v529, 112
  %v578 = vpop.permute.xlu0 %577
  %579 = vrot.lane.b32.xlu0 %v531, 112
  %v580 = vpop.permute.xlu0 %579
  %581 = vrot.lane.b32.xlu0 %v533, 112
  %v582 = vpop.permute.xlu0 %581
  %583 = vrot.lane.b32.xlu0 %v536, 112
  %v584 = vpop.permute.xlu0 %583
  %585 = vrot.lane.b32.xlu0 %v538, 112
  %v586 = vpop.permute.xlu0 %585
  %587 = vrot.lane.b32.xlu0 %v540, 112
  %v588 = vpop.permute.xlu0 %587
  %vm613 = vcmask 228352
  %v614 = vsel %vm613, %v33, %v155
  %v615 = vsel %vm613, %v34, %v157
  %v616 = vsel %vm613, %v35, %v159
  %v617 = vsel %vm613, %v37, %v161
  %v618 = vsel %vm613, %v38, %v163
  %v619 = vsel %vm613, %v39, %v165
  %v620 = vsel %vm613, %v41, %v167
  %v621 = vsel %vm613, %v42, %v169
  %v622 = vsel %vm613, %v43, %v171
  %v623 = vsel %vm613, %v45, %v173
  %v624 = vsel %vm613, %v46, %v175
  %v625 = vsel %vm613, %v47, %v177
  %v626 = vsel %vm613, %v49, %v179
  %v627 = vsel %vm613, %v50, %v181
  %v628 = vsel %vm613, %v51, %v183
  %v629 = vsel %vm613, %v53, %v185
  %v630 = vsel %vm613, %v54, %v187
  %v631 = vsel %vm613, %v55, %v189
  %v632 = vsel %vm613, %v57, %v191
  %v633 = vsel %vm613, %v58, %v193
  %v634 = vsel %vm613, %v59, %v195
  %v635 = vsel %vm613, %v61, %v197
  %v636 = vsel %vm613, %v62, %v199
  %v637 = vsel %vm613, %v63, %v201
  %vm638 = vcmask 457728
  %v639 = vsel %vm638, %v614, %v284
  %v640 = vsel %vm638, %v615, %v286
  %v641 = vsel %vm638, %v616, %v288
  %v642 = vsel %vm638, %v617, %v290
  %v643 = vsel %vm638, %v618, %v292
  %v644 = vsel %vm638, %v619, %v294
  %v645 = vsel %vm638, %v620, %v296
  %v646 = vsel %vm638, %v621, %v298
  %v647 = vsel %vm638, %v622, %v300
  %v648 = vsel %vm638, %v623, %v302
  %v649 = vsel %vm638, %v624, %v304
  %v650 = vsel %vm638, %v625, %v306
  %v651 = vsel %vm638, %v626, %v308
  %v652 = vsel %vm638, %v627, %v310
  %v653 = vsel %vm638, %v628, %v312
  %v654 = vsel %vm638, %v629, %v314
  %v655 = vsel %vm638, %v630, %v316
  %v656 = vsel %vm638, %v631, %v318
  %v657 = vsel %vm638, %v632, %v320
  %v658 = vsel %vm638, %v633, %v322
  %v659 = vsel %vm638, %v634, %v324
  %v660 = vsel %vm638, %v635, %v326
  %v661 = vsel %vm638, %v636, %v328
  %v662 = vsel %vm638, %v637, %v330
  %vm663 = vcmask 687104
  %v664 = vsel %vm663, %v639, %v413
  %v665 = vsel %vm663, %v640, %v415
  %v666 = vsel %vm663, %v641, %v417
  %v667 = vsel %vm663, %v642, %v419
  %v668 = vsel %vm663, %v643, %v421
  %v669 = vsel %vm663, %v644, %v423
  %v670 = vsel %vm663, %v645, %v425
  %v671 = vsel %vm663, %v646, %v427
  %v672 = vsel %vm663, %v647, %v429
  %v673 = vsel %vm663, %v648, %v431
  %v674 = vsel %vm663, %v649, %v433
  %v675 = vsel %vm663, %v650, %v435
  %v676 = vsel %vm663, %v651, %v437
  %v677 = vsel %vm663, %v652, %v439
  %v678 = vsel %vm663, %v653, %v441
  %v679 = vsel %vm663, %v654, %v443
  %v680 = vsel %vm663, %v655, %v445
  %v681 = vsel %vm663, %v656, %v447
  %v682 = vsel %vm663, %v657, %v449
  %v683 = vsel %vm663, %v658, %v451
  %v684 = vsel %vm663, %v659, %v453
  %v685 = vsel %vm663, %v660, %v455
  %v686 = vsel %vm663, %v661, %v457
  %v687 = vsel %vm663, %v662, %v459
  %vm688 = vcmask 916480
  %v689 = vsel %vm688, %v664, %v542
  %v690 = vsel %vm688, %v665, %v544
  %v691 = vsel %vm688, %v666, %v546
  %v692 = vsel %vm688, %v667, %v548
  %v693 = vsel %vm688, %v668, %v550
  %v694 = vsel %vm688, %v669, %v552
  %v695 = vsel %vm688, %v670, %v554
  %v696 = vsel %vm688, %v671, %v556
  %v697 = vsel %vm688, %v672, %v558
  %v698 = vsel %vm688, %v673, %v560
  %v699 = vsel %vm688, %v674, %v562
  %v700 = vsel %vm688, %v675, %v564
  %v701 = vsel %vm688, %v676, %v566
  %v702 = vsel %vm688, %v677, %v568
  %v703 = vsel %vm688, %v678, %v570
  %v704 = vsel %vm688, %v679, %v572
  %v705 = vsel %vm688, %v680, %v574
  %v706 = vsel %vm688, %v681, %v576
  %v707 = vsel %vm688, %v682, %v578
  %v708 = vsel %vm688, %v683, %v580
  %v709 = vsel %vm688, %v684, %v582
  %v710 = vsel %vm688, %v685, %v584
  %v711 = vsel %vm688, %v686, %v586
  %v712 = vsel %vm688, %v687, %v588
  %v713 = vpack.c.bf16 %v690, %v689
  %v714 = vpack.c.bf16 %v544, %v542
  %v715 = vpack.c.bf16 %v692, %v691
  %v716 = vpack.c.bf16 %v548, %v546
  %v717 = vpack.c.bf16 %v694, %v693
  %v718 = vpack.c.bf16 %v552, %v550
  %v719 = vpack.c.bf16 %v696, %v695
  %v720 = vpack.c.bf16 %v556, %v554
  %v721 = vpack.c.bf16 %v698, %v697
  %v722 = vpack.c.bf16 %v560, %v558
  %v723 = vpack.c.bf16 %v700, %v699
  %v724 = vpack.c.bf16 %v564, %v562
  %v725 = vpack.c.bf16 %v702, %v701
  %v726 = vpack.c.bf16 %v568, %v566
  %v727 = vpack.c.bf16 %v704, %v703
  %v728 = vpack.c.bf16 %v572, %v570
  %v729 = vpack.c.bf16 %v706, %v705
  %v730 = vpack.c.bf16 %v576, %v574
  %v731 = vpack.c.bf16 %v708, %v707
  %v732 = vpack.c.bf16 %v580, %v578
  %v733 = vpack.c.bf16 %v710, %v709
  %v734 = vpack.c.bf16 %v584, %v582
  %v735 = vpack.c.bf16 %v712, %v711
  %v736 = vpack.c.bf16 %v588, %v586
  %v737 = vld [vmem:[%s1] sm:$0xff]
  %v738 = vld [vmem:[%s1 + $0x8] sm:$0xff]
  %v739 = vld [vmem:[%s1 + $0x10] sm:$0xff]
  %v740 = vld [vmem:[%s1 + $0x18] sm:$0xff]
  %v741 = vld [vmem:[%s1 + $0x20] sm:$0xff]
  %v742 = vld [vmem:[%s1 + $0x28] sm:$0xff]
  %v743 = vld [vmem:[%s1 + $0x30] sm:$0xff]
  %v744 = vld [vmem:[%s1 + $0x38] sm:$0xff]
  %v745 = vld [vmem:[%s1 + $0x40] sm:$0xff]
  %v746 = vld [vmem:[%s1 + $0x48] sm:$0xff]
  %v747 = vld [vmem:[%s1 + $0x50] sm:$0xff]
  %v748 = vld [vmem:[%s1 + $0x58] sm:$0xff]
  %v749 = vld [vmem:[%s1 + $0x60] sm:$0xff]
  %v750 = vld [vmem:[%s1 + $0x68] sm:$0xff]
  %v751 = vld [vmem:[%s1 + $0x70] sm:$0xff]
  %v752 = vld [vmem:[%s1 + $0x78] sm:$0xff]
  %v753 = vld [vmem:[%s1 + $0x80] sm:$0xff]
  %v754 = vld [vmem:[%s1 + $0x88] sm:$0x33]
  %v773 = vunpack.c.l.b16 %v737
  %v774 = vunpack.c.h.b16 %v737
  %v775 = vunpack.c.l.b16 %v738
  %v776 = vunpack.c.h.b16 %v738
  %v777 = vunpack.c.l.b16 %v739
  %v778 = vunpack.c.h.b16 %v739
  %v779 = vunpack.c.l.b16 %v740
  %v780 = vunpack.c.h.b16 %v740
  %v781 = vunpack.c.l.b16 %v741
  %v782 = vunpack.c.h.b16 %v741
  %v783 = vunpack.c.l.b16 %v742
  %v784 = vunpack.c.h.b16 %v742
  %v785 = vunpack.c.l.b16 %v743
  %v786 = vunpack.c.h.b16 %v743
  %v787 = vunpack.c.l.b16 %v744
  %v788 = vunpack.c.h.b16 %v744
  %v789 = vunpack.c.l.b16 %v745
  %v790 = vunpack.c.h.b16 %v745
  %v791 = vunpack.c.l.b16 %v746
  %v792 = vunpack.c.h.b16 %v746
  %v793 = vunpack.c.l.b16 %v747
  %v794 = vunpack.c.h.b16 %v747
  %v795 = vunpack.c.l.b16 %v748
  %v796 = vunpack.c.h.b16 %v748
  %v797 = vunpack.c.l.b16 %v749
  %v798 = vunpack.c.h.b16 %v749
  %v799 = vunpack.c.l.b16 %v750
  %v800 = vunpack.c.h.b16 %v750
  %v801 = vunpack.c.l.b16 %v751
  %v802 = vunpack.c.h.b16 %v751
  %v803 = vunpack.c.l.b16 %v752
  %v804 = vunpack.c.h.b16 %v752
  %v805 = vunpack.c.l.b16 %v753
  %v806 = vunpack.c.h.b16 %v753
  %v807 = vunpack.c.l.b16 %v754
  %v808 = vunpack.c.h.b16 %v754
  %v809 = vpack.c.b16 %v775, %v773
  %v810 = vpack.c.b16 %v776, %v774
  %v811 = vpack.c.b16 %v779, %v777
  %v812 = vpack.c.b16 %v780, %v778
  %v813 = vpack.c.b16 %v783, %v781
  %v814 = vpack.c.b16 %v784, %v782
  %v815 = vpack.c.b16 %v787, %v785
  %v816 = vpack.c.b16 %v788, %v786
  %v817 = vpack.c.b16 %v791, %v789
  %v818 = vpack.c.b16 %v792, %v790
  %v819 = vpack.c.b16 %v795, %v793
  %v820 = vpack.c.b16 %v796, %v794
  %v821 = vpack.c.b16 %v799, %v797
  %v822 = vpack.c.b16 %v800, %v798
  %v823 = vpack.c.b16 %v803, %v801
  %v824 = vpack.c.b16 %v804, %v802
  %v825 = vpack.c.b16 %v807, %v805
  %v826 = vpack.c.b16 %v808, %v806
  %vm843 = vcmask 97280
  %v845 = vsel %vm843, %v714, 0
  %v848 = vsel %vm843, %v716, 0
  %v851 = vsel %vm843, %v718, 0
  %v854 = vsel %vm843, %v720, 0
  %v857 = vsel %vm843, %v722, 0
  %v860 = vsel %vm843, %v724, 0
  %v863 = vsel %vm843, %v726, 0
  %v866 = vsel %vm843, %v728, 0
  %v869 = vsel %vm843, %v730, 0
  %v872 = vsel %vm843, %v732, 0
  %v875 = vsel %vm843, %v734, 0
  %v878 = vsel %vm843, %v736, 0
  %v881 = vsel %vm226, %v825, 0
  %v884 = vsel %vm226, %v826, 0
  %886 = vmatprep.subr.bf16.mxu0 %v810
  %887 = vmatpush1.bf16.msra.mxu0 %v809
  %888 = vmatprep.subr.bf16.mxu0 %v812
  %889 = vmatpush1.bf16.msra.mxu0 %v811
  %890 = vmatprep.subr.bf16.mxu0 %v814
  %891 = vmatpush1.bf16.msra.mxu0 %v813
  %892 = vmatprep.subr.bf16.mxu0 %v816
  %893 = vmatpush1.bf16.msra.mxu0 %v815
  %894 = vmatprep.subr.bf16.mxu0 %v818
  %895 = vmatpush1.bf16.msra.mxu0 %v817
  %896 = vmatprep.subr.bf16.mxu0 %v820
  %897 = vmatpush1.bf16.msra.mxu0 %v819
  %898 = vmatprep.subr.bf16.mxu0 %v822
  %899 = vmatpush1.bf16.msra.mxu0 %v821
  %900 = vmatprep.subr.bf16.mxu0 %v824
  %901 = vmatpush1.bf16.msra.mxu0 %v823
  %902 = vmatprep.subr.bf16.mxu0 %v884
  %903 = vmatpush1.bf16.msra.mxu0 %v881
  %904 = vmatprep.subr.bf16.mxu0 0
  %905 = vmatpush1.bf16.msra.mxu0 0
  %906 = vmatprep.subr.bf16.mxu0 0
  %907 = vmatpush1.bf16.msra.mxu0 0
  %908 = vmatprep.subr.bf16.mxu0 0
  %909 = vmatpush1.bf16.msra.mxu0 0
  %910 = vmatprep.subr.bf16.mxu0 0
  %911 = vmatpush1.bf16.msra.mxu0 0
  %912 = vmatprep.subr.bf16.mxu0 0
  %913 = vmatpush1.bf16.msra.mxu0 0
  %914 = vmatprep.subr.bf16.mxu0 0
  %915 = vmatpush1.bf16.msra.mxu0 0
  %916 = vmatprep.subr.bf16.mxu0 0
  %917 = vmatpush1.bf16.msra.mxu0 0
  %918 = vmatprep.mubr.bf16.mxu0 %v845
  %919 = vmatmul.mubr.bf16.gmra.mrb[0].mxu0 %v713
  %v920 = vpop.f32.mrb[0].mxu0
  %v921 = vadd.f32 0.0, %v920
  %v922 = vpop.f32.mrb[0].mxu0
  %v923 = vadd.f32 0.0, %v922
  %v924 = vpop.f32.mrb[0].mxu0
  %v925 = vadd.f32 0.0, %v924
  %v926 = vpop.f32.mrb[0].mxu0
  %v927 = vadd.f32 0.0, %v926
  %928 = vmatprep.mubr.bf16.mxu0 %v848
  %929 = vmatmul.mubr.bf16.gmra.mrb[0].mxu0 %v715
  %v930 = vpop.f32.mrb[0].mxu0
  %v931 = vadd.f32 0.0, %v930
  %v932 = vpop.f32.mrb[0].mxu0
  %v933 = vadd.f32 0.0, %v932
  %v934 = vpop.f32.mrb[0].mxu0
  %v935 = vadd.f32 0.0, %v934
  %v936 = vpop.f32.mrb[0].mxu0
  %v937 = vadd.f32 0.0, %v936
  %938 = vmatprep.mubr.bf16.mxu0 %v851
  %939 = vmatmul.mubr.bf16.gmra.mrb[0].mxu0 %v717
  %v940 = vpop.f32.mrb[0].mxu0
  %v941 = vadd.f32 0.0, %v940
  %v942 = vpop.f32.mrb[0].mxu0
  %v943 = vadd.f32 0.0, %v942
  %v944 = vpop.f32.mrb[0].mxu0
  %v945 = vadd.f32 0.0, %v944
  %v946 = vpop.f32.mrb[0].mxu0
  %v947 = vadd.f32 0.0, %v946
  %948 = vmatprep.mubr.bf16.mxu0 %v854
  %949 = vmatmul.mubr.bf16.gmra.mrb[0].mxu0 %v719
  %v950 = vpop.f32.mrb[0].mxu0
  %v951 = vadd.f32 0.0, %v950
  %v952 = vpop.f32.mrb[0].mxu0
  %v953 = vadd.f32 0.0, %v952
  %v954 = vpop.f32.mrb[0].mxu0
  %v955 = vadd.f32 0.0, %v954
  %v956 = vpop.f32.mrb[0].mxu0
  %v957 = vadd.f32 0.0, %v956
  %958 = vmatprep.mubr.bf16.mxu0 %v857
  %959 = vmatmul.mubr.bf16.gmra.mrb[0].mxu0 %v721
  %v960 = vpop.f32.mrb[0].mxu0
  %v961 = vadd.f32 0.0, %v960
  %v962 = vpop.f32.mrb[0].mxu0
  %v963 = vadd.f32 0.0, %v962
  %v964 = vpop.f32.mrb[0].mxu0
  %v965 = vadd.f32 0.0, %v964
  %v966 = vpop.f32.mrb[0].mxu0
  %v967 = vadd.f32 0.0, %v966
  %968 = vmatprep.mubr.bf16.mxu0 %v860
  %969 = vmatmul.mubr.bf16.gmra.mrb[0].mxu0 %v723
  %v970 = vpop.f32.mrb[0].mxu0
  %v971 = vadd.f32 0.0, %v970
  %v972 = vpop.f32.mrb[0].mxu0
  %v973 = vadd.f32 0.0, %v972
  %v974 = vpop.f32.mrb[0].mxu0
  %v975 = vadd.f32 0.0, %v974
  %v976 = vpop.f32.mrb[0].mxu0
  %v977 = vadd.f32 0.0, %v976
  %978 = vmatprep.mubr.bf16.mxu0 %v863
  %979 = vmatmul.mubr.bf16.gmra.mrb[0].mxu0 %v725
  %v980 = vpop.f32.mrb[0].mxu0
  %v981 = vadd.f32 0.0, %v980
  %v982 = vpop.f32.mrb[0].mxu0
  %v983 = vadd.f32 0.0, %v982
  %v984 = vpop.f32.mrb[0].mxu0
  %v985 = vadd.f32 0.0, %v984
  %v986 = vpop.f32.mrb[0].mxu0
  %v987 = vadd.f32 0.0, %v986
  %988 = vmatprep.mubr.bf16.mxu0 %v866
  %989 = vmatmul.mubr.bf16.gmra.mrb[0].mxu0 %v727
  %v990 = vpop.f32.mrb[0].mxu0
  %v991 = vadd.f32 0.0, %v990
  %v992 = vpop.f32.mrb[0].mxu0
  %v993 = vadd.f32 0.0, %v992
  %v994 = vpop.f32.mrb[0].mxu0
  %v995 = vadd.f32 0.0, %v994
  %v996 = vpop.f32.mrb[0].mxu0
  %v997 = vadd.f32 0.0, %v996
  %998 = vmatprep.mubr.bf16.mxu0 %v869
  %999 = vmatmul.mubr.bf16.gmra.mrb[0].mxu0 %v729
  %v1000 = vpop.f32.mrb[0].mxu0
  %v1001 = vadd.f32 0.0, %v1000
  %v1002 = vpop.f32.mrb[0].mxu0
  %v1003 = vadd.f32 0.0, %v1002
  %v1004 = vpop.f32.mrb[0].mxu0
  %v1005 = vadd.f32 0.0, %v1004
  %v1006 = vpop.f32.mrb[0].mxu0
  %v1007 = vadd.f32 0.0, %v1006
  %1008 = vmatprep.mubr.bf16.mxu0 %v872
  %1009 = vmatmul.mubr.bf16.gmra.mrb[0].mxu0 %v731
  %v1010 = vpop.f32.mrb[0].mxu0
  %v1011 = vadd.f32 0.0, %v1010
  %v1012 = vpop.f32.mrb[0].mxu0
  %v1013 = vadd.f32 0.0, %v1012
  %v1014 = vpop.f32.mrb[0].mxu0
  %v1015 = vadd.f32 0.0, %v1014
  %v1016 = vpop.f32.mrb[0].mxu0
  %v1017 = vadd.f32 0.0, %v1016
  %1018 = vmatprep.mubr.bf16.mxu0 %v875
  %1019 = vmatmul.mubr.bf16.gmra.mrb[0].mxu0 %v733
  %v1020 = vpop.f32.mrb[0].mxu0
  %v1021 = vadd.f32 0.0, %v1020
  %v1022 = vpop.f32.mrb[0].mxu0
  %v1023 = vadd.f32 0.0, %v1022
  %v1024 = vpop.f32.mrb[0].mxu0
  %v1025 = vadd.f32 0.0, %v1024
  %v1026 = vpop.f32.mrb[0].mxu0
  %v1027 = vadd.f32 0.0, %v1026
  %1028 = vmatprep.mubr.bf16.mxu0 %v878
  %1029 = vmatmul.mubr.bf16.gmra.mrb[0].mxu0 %v735
  %v1030 = vpop.f32.mrb[0].mxu0
  %v1031 = vadd.f32 0.0, %v1030
  %v1032 = vpop.f32.mrb[0].mxu0
  %v1033 = vadd.f32 0.0, %v1032
  %v1034 = vpop.f32.mrb[0].mxu0
  %v1035 = vadd.f32 0.0, %v1034
  %v1036 = vpop.f32.mrb[0].mxu0
  %v1037 = vadd.f32 0.0, %v1036
  %1038 = vdwg.mxu0
  %v1039 = vmax.f32 %v921, %v923
  %v1040 = vmax.f32 %v925, %v927
  %v1041 = vmax.f32 %v931, %v933
  %v1042 = vmax.f32 %v935, %v937
  %v1043 = vmax.f32 %v941, %v943
  %v1044 = vmax.f32 %v945, %v947
  %v1045 = vmax.f32 %v951, %v953
  %v1046 = vmax.f32 %v955, %v957
  %v1047 = vmax.f32 %v961, %v963
  %v1048 = vmax.f32 %v965, %v967
  %v1049 = vmax.f32 %v971, %v973
  %v1050 = vmax.f32 %v975, %v977
  %v1051 = vmax.f32 %v981, %v983
  %v1052 = vmax.f32 %v985, %v987
  %v1053 = vmax.f32 %v991, %v993
  %v1054 = vmax.f32 %v995, %v997
  %v1055 = vmax.f32 %v1001, %v1003
  %v1056 = vmax.f32 %v1005, %v1007
  %v1057 = vmax.f32 %v1011, %v1013
  %v1058 = vmax.f32 %v1015, %v1017
  %v1059 = vmax.f32 %v1021, %v1023
  %v1060 = vmax.f32 %v1025, %v1027
  %v1061 = vmax.f32 %v1031, %v1033
  %v1062 = vmax.f32 %v1035, %v1037
  %1063 = vst [vmem:[#allocation2] sm:$0xff] %v1039
  %1064 = vst [vmem:[#allocation2 + $0x8] sm:$0xff] %v1040
  %1065 = vst [vmem:[#allocation2 + $0x10] sm:$0xff] %v1041
  %1066 = vst [vmem:[#allocation2 + $0x18] sm:$0xff] %v1042
  %1067 = vst [vmem:[#allocation2 + $0x20] sm:$0xff] %v1043
  %1068 = vst [vmem:[#allocation2 + $0x28] sm:$0xff] %v1044
  %1069 = vst [vmem:[#allocation2 + $0x30] sm:$0xff] %v1045
  %1070 = vst [vmem:[#allocation2 + $0x38] sm:$0xff] %v1046
  %1071 = vst [vmem:[#allocation2 + $0x40] sm:$0xff] %v1047
  %1072 = vst [vmem:[#allocation2 + $0x48] sm:$0xff] %v1048
  %1073 = vst [vmem:[#allocation2 + $0x50] sm:$0xff] %v1049
  %1074 = vst [vmem:[#allocation2 + $0x58] sm:$0xff] %v1050
  %1075 = vst [vmem:[#allocation2 + $0x60] sm:$0xff] %v1051
  %1076 = vst [vmem:[#allocation2 + $0x68] sm:$0xff] %v1052
  %1077 = vst [vmem:[#allocation2 + $0x70] sm:$0xff] %v1053
  %1078 = vst [vmem:[#allocation2 + $0x78] sm:$0xff] %v1054
  %1079 = vst [vmem:[#allocation2 + $0x80] sm:$0xff] %v1055
  %1080 = vst [vmem:[#allocation2 + $0x88] sm:$0xff] %v1056
  %1081 = vst [vmem:[#allocation2 + $0x90] sm:$0xff] %v1057
  %1082 = vst [vmem:[#allocation2 + $0x98] sm:$0xff] %v1058
  %1083 = vst [vmem:[#allocation2 + $0xa0] sm:$0xff] %v1059
  %1084 = vst [vmem:[#allocation2 + $0xa8] sm:$0xff] %v1060
  %1085 = vst [vmem:[#allocation2 + $0xb0] sm:$0xff] %v1061
  %1086 = vst [vmem:[#allocation2 + $0xb8] sm:$0xff] %v1062
  %v1087 = vld [vmem:[#allocation2] ss:$2 sm:$0xff]
  %s1088 = scalar_lea.vmem [#allocation2], 16
  %v1089 = vld [vmem:[%s1088] ss:$2 sm:$0xf]
  %s1090 = scalar_lea.vmem [#allocation2], 24
  %v1091 = vld [vmem:[%s1090] ss:$2 sm:$0xff]
  %s1092 = scalar_lea.vmem [#allocation2], 40
  %v1093 = vld [vmem:[%s1092] ss:$2 sm:$0xf]
  %s1094 = scalar_lea.vmem [#allocation2], 48
  %v1095 = vld [vmem:[%s1094] ss:$2 sm:$0xff]
  %s1096 = scalar_lea.vmem [#allocation2], 64
  %v1097 = vld [vmem:[%s1096] ss:$2 sm:$0xf]
  %s1098 = scalar_lea.vmem [#allocation2], 72
  %v1099 = vld [vmem:[%s1098] ss:$2 sm:$0xff]
  %s1100 = scalar_lea.vmem [#allocation2], 88
  %v1101 = vld [vmem:[%s1100] ss:$2 sm:$0xf]
  %s1102 = scalar_lea.vmem [#allocation2], 96
  %v1103 = vld [vmem:[%s1102] ss:$2 sm:$0xff]
  %s1104 = scalar_lea.vmem [#allocation2], 112
  %v1105 = vld [vmem:[%s1104] ss:$2 sm:$0xf]
  %s1106 = scalar_lea.vmem [#allocation2], 120
  %v1107 = vld [vmem:[%s1106] ss:$2 sm:$0xff]
  %s1108 = scalar_lea.vmem [#allocation2], 136
  %v1109 = vld [vmem:[%s1108] ss:$2 sm:$0xf]
  %s1110 = scalar_lea.vmem [#allocation2], 144
  %v1111 = vld [vmem:[%s1110] ss:$2 sm:$0xff]
  %s1112 = scalar_lea.vmem [#allocation2], 160
  %v1113 = vld [vmem:[%s1112] ss:$2 sm:$0xf]
  %s1114 = scalar_lea.vmem [#allocation2], 168
  %v1115 = vld [vmem:[%s1114] ss:$2 sm:$0xff]
  %s1116 = scalar_lea.vmem [#allocation2], 184
  %v1117 = vld [vmem:[%s1116] ss:$2 sm:$0xf]
  %s1118 = scalar_lea.vmem [#allocation2], 1
  %v1119 = vld [vmem:[%s1118] ss:$2 sm:$0xff]
  %s1120 = scalar_lea.vmem [#allocation2], 17
  %v1121 = vld [vmem:[%s1120] ss:$2 sm:$0xf]
  %s1122 = scalar_lea.vmem [#allocation2], 25
  %v1123 = vld [vmem:[%s1122] ss:$2 sm:$0xff]
  %s1124 = scalar_lea.vmem [#allocation2], 41
  %v1125 = vld [vmem:[%s1124] ss:$2 sm:$0xf]
  %s1126 = scalar_lea.vmem [#allocation2], 49
  %v1127 = vld [vmem:[%s1126] ss:$2 sm:$0xff]
  %s1128 = scalar_lea.vmem [#allocation2], 65
  %v1129 = vld [vmem:[%s1128] ss:$2 sm:$0xf]
  %s1130 = scalar_lea.vmem [#allocation2], 73
  %v1131 = vld [vmem:[%s1130] ss:$2 sm:$0xff]
  %s1132 = scalar_lea.vmem [#allocation2], 89
  %v1133 = vld [vmem:[%s1132] ss:$2 sm:$0xf]
  %s1134 = scalar_lea.vmem [#allocation2], 97
  %v1135 = vld [vmem:[%s1134] ss:$2 sm:$0xff]
  %s1136 = scalar_lea.vmem [#allocation2], 113
  %v1137 = vld [vmem:[%s1136] ss:$2 sm:$0xf]
  %s1138 = scalar_lea.vmem [#allocation2], 121
  %v1139 = vld [vmem:[%s1138] ss:$2 sm:$0xff]
  %s1140 = scalar_lea.vmem [#allocation2], 137
  %v1141 = vld [vmem:[%s1140] ss:$2 sm:$0xf]
  %s1142 = scalar_lea.vmem [#allocation2], 145
  %v1143 = vld [vmem:[%s1142] ss:$2 sm:$0xff]
  %s1144 = scalar_lea.vmem [#allocation2], 161
  %v1145 = vld [vmem:[%s1144] ss:$2 sm:$0xf]
  %s1146 = scalar_lea.vmem [#allocation2], 169
  %v1147 = vld [vmem:[%s1146] ss:$2 sm:$0xff]
  %s1148 = scalar_lea.vmem [#allocation2], 185
  %v1149 = vld [vmem:[%s1148] ss:$2 sm:$0xf]
  %v1150 = vmax.f32 %v1087, %v1119
  %v1151 = vmax.f32 %v1089, %v1121
  %v1152 = vmax.f32 %v1091, %v1123
  %v1153 = vmax.f32 %v1093, %v1125
  %v1154 = vmax.f32 %v1095, %v1127
  %v1155 = vmax.f32 %v1097, %v1129
  %v1156 = vmax.f32 %v1099, %v1131
  %v1157 = vmax.f32 %v1101, %v1133
  %v1158 = vmax.f32 %v1103, %v1135
  %v1159 = vmax.f32 %v1105, %v1137
  %v1160 = vmax.f32 %v1107, %v1139
  %v1161 = vmax.f32 %v1109, %v1141
  %v1162 = vmax.f32 %v1111, %v1143
  %v1163 = vmax.f32 %v1113, %v1145
  %v1164 = vmax.f32 %v1115, %v1147
  %v1165 = vmax.f32 %v1117, %v1149
  %v1166 = vld [vmem:[%s2] sm:$0x1]
  %v1168 = vlaneseq
  %v1169 = vshrl.u32 %v1168, 7
  %v1170 = vsub.s32 0, %v1169
  %v1171 = vrot.slane %v1166, %v1170
  %v1173 = vadd.f32 %v1150, %v1171
  %v1174 = vadd.f32 %v1151, %v1171
  %v1175 = vadd.f32 %v1152, %v1171
  %v1176 = vadd.f32 %v1153, %v1171
  %v1177 = vadd.f32 %v1154, %v1171
  %v1178 = vadd.f32 %v1155, %v1171
  %v1179 = vadd.f32 %v1156, %v1171
  %v1180 = vadd.f32 %v1157, %v1171
  %v1181 = vadd.f32 %v1158, %v1171
  %v1182 = vadd.f32 %v1159, %v1171
  %v1183 = vadd.f32 %v1160, %v1171
  %v1184 = vadd.f32 %v1161, %v1171
  %v1185 = vadd.f32 %v1162, %v1171
  %v1186 = vadd.f32 %v1163, %v1171
  %v1187 = vadd.f32 %v1164, %v1171
  %v1188 = vadd.f32 %v1165, %v1171
  %v1189 = vmax.f32 %v1173, 0.0
  %v1190 = vmax.f32 %v1174, 0.0
  %v1191 = vmax.f32 %v1175, 0.0
  %v1192 = vmax.f32 %v1176, 0.0
  %v1193 = vmax.f32 %v1177, 0.0
  %v1194 = vmax.f32 %v1178, 0.0
  %v1195 = vmax.f32 %v1179, 0.0
  %v1196 = vmax.f32 %v1180, 0.0
  %v1197 = vmax.f32 %v1181, 0.0
  %v1198 = vmax.f32 %v1182, 0.0
  %v1199 = vmax.f32 %v1183, 0.0
  %v1200 = vmax.f32 %v1184, 0.0
  %v1201 = vmax.f32 %v1185, 0.0
  %v1202 = vmax.f32 %v1186, 0.0
  %v1203 = vmax.f32 %v1187, 0.0
  %v1204 = vmax.f32 %v1188, 0.0
  %v1205 = vpack.c.bf16 %v1190, %v1189
  %v1206 = vpack.c.bf16 %v1192, %v1191
  %v1207 = vpack.c.bf16 %v1194, %v1193
  %v1208 = vpack.c.bf16 %v1196, %v1195
  %v1209 = vpack.c.bf16 %v1198, %v1197
  %v1210 = vpack.c.bf16 %v1200, %v1199
  %v1211 = vpack.c.bf16 %v1202, %v1201
  %v1212 = vpack.c.bf16 %v1204, %v1203
  %v1214 = vshrl.u32 %v1205, 16
  %v1216 = vshll.u32 %v1205, 16
  %v1218 = vrot.slane %v1216, 1
  %v1219 = vor.u32 %v1214, %v1218
  %v1221 = vshrl.u32 %v1206, 16
  %v1223 = vshll.u32 %v1206, 16
  %v1225 = vrot.slane %v1223, 1
  %v1226 = vor.u32 %v1221, %v1225
  %v1228 = vshrl.u32 %v1207, 16
  %v1230 = vshll.u32 %v1207, 16
  %v1232 = vrot.slane %v1230, 1
  %v1233 = vor.u32 %v1228, %v1232
  %v1235 = vshrl.u32 %v1208, 16
  %v1237 = vshll.u32 %v1208, 16
  %v1239 = vrot.slane %v1237, 1
  %v1240 = vor.u32 %v1235, %v1239
  %v1242 = vshrl.u32 %v1209, 16
  %v1244 = vshll.u32 %v1209, 16
  %v1246 = vrot.slane %v1244, 1
  %v1247 = vor.u32 %v1242, %v1246
  %v1249 = vshrl.u32 %v1210, 16
  %v1251 = vshll.u32 %v1210, 16
  %v1253 = vrot.slane %v1251, 1
  %v1254 = vor.u32 %v1249, %v1253
  %v1256 = vshrl.u32 %v1211, 16
  %v1258 = vshll.u32 %v1211, 16
  %v1260 = vrot.slane %v1258, 1
  %v1261 = vor.u32 %v1256, %v1260
  %v1263 = vshrl.u32 %v1212, 16
  %v1265 = vshll.u32 %v1212, 16
  %v1267 = vrot.slane %v1265, 1
  %v1268 = vor.u32 %v1263, %v1267
  %v1277 = vrot.slane %v1205, 1
  %v1278 = vrot.slane %v1206, 1
  %v1279 = vrot.slane %v1207, 1
  %v1280 = vrot.slane %v1208, 1
  %v1281 = vrot.slane %v1209, 1
  %v1282 = vrot.slane %v1210, 1
  %v1283 = vrot.slane %v1211, 1
  %v1284 = vrot.slane %v1212, 1
  %v1285 = vrot.slane %v1214, 1
  %v1286 = vrot.slane %v1216, 2
  %v1287 = vor.u32 %v1285, %v1286
  %v1288 = vrot.slane %v1221, 1
  %v1289 = vrot.slane %v1223, 2
  %v1290 = vor.u32 %v1288, %v1289
  %v1291 = vrot.slane %v1228, 1
  %v1292 = vrot.slane %v1230, 2
  %v1293 = vor.u32 %v1291, %v1292
  %v1294 = vrot.slane %v1235, 1
  %v1295 = vrot.slane %v1237, 2
  %v1296 = vor.u32 %v1294, %v1295
  %v1297 = vrot.slane %v1242, 1
  %v1298 = vrot.slane %v1244, 2
  %v1299 = vor.u32 %v1297, %v1298
  %v1300 = vrot.slane %v1249, 1
  %v1301 = vrot.slane %v1251, 2
  %v1302 = vor.u32 %v1300, %v1301
  %v1303 = vrot.slane %v1256, 1
  %v1304 = vrot.slane %v1258, 2
  %v1305 = vor.u32 %v1303, %v1304
  %v1306 = vrot.slane %v1263, 1
  %v1307 = vrot.slane %v1265, 2
  %v1308 = vor.u32 %v1306, %v1307
  %v1309 = vrot.slane %v1205, 2
  %v1310 = vrot.slane %v1206, 2
  %v1311 = vrot.slane %v1207, 2
  %v1312 = vrot.slane %v1208, 2
  %v1313 = vrot.slane %v1209, 2
  %v1314 = vrot.slane %v1210, 2
  %v1315 = vrot.slane %v1211, 2
  %v1316 = vrot.slane %v1212, 2
  %v1317 = vunpack.c.l.b16 %v1205
  %v1318 = vunpack.c.l.b16 %v1219
  %v1319 = vunpack.c.l.b16 %v1277
  %v1320 = vunpack.c.l.b16 %v1287
  %v1321 = vunpack.c.l.b16 %v1309
  %v1322 = vunpack.c.l.b16 %v1206
  %v1323 = vunpack.c.l.b16 %v1226
  %v1324 = vunpack.c.l.b16 %v1278
  %v1325 = vunpack.c.l.b16 %v1290
  %v1326 = vunpack.c.l.b16 %v1310
  %v1327 = vunpack.c.l.b16 %v1207
  %v1328 = vunpack.c.l.b16 %v1233
  %v1329 = vunpack.c.l.b16 %v1279
  %v1330 = vunpack.c.l.b16 %v1293
  %v1331 = vunpack.c.l.b16 %v1311
  %v1332 = vunpack.c.l.b16 %v1208
  %v1333 = vunpack.c.l.b16 %v1240
  %v1334 = vunpack.c.l.b16 %v1280
  %v1335 = vunpack.c.l.b16 %v1296
  %v1336 = vunpack.c.l.b16 %v1312
  %v1337 = vunpack.c.l.b16 %v1209
  %v1338 = vunpack.c.l.b16 %v1247
  %v1339 = vunpack.c.l.b16 %v1281
  %v1340 = vunpack.c.l.b16 %v1299
  %v1341 = vunpack.c.l.b16 %v1313
  %v1342 = vunpack.c.l.b16 %v1210
  %v1343 = vunpack.c.l.b16 %v1254
  %v1344 = vunpack.c.l.b16 %v1282
  %v1345 = vunpack.c.l.b16 %v1302
  %v1346 = vunpack.c.l.b16 %v1314
  %v1347 = vunpack.c.l.b16 %v1211
  %v1348 = vunpack.c.l.b16 %v1261
  %v1349 = vunpack.c.l.b16 %v1283
  %v1350 = vunpack.c.l.b16 %v1305
  %v1351 = vunpack.c.l.b16 %v1315
  %v1352 = vunpack.c.l.b16 %v1212
  %v1353 = vunpack.c.l.b16 %v1268
  %v1354 = vunpack.c.l.b16 %v1284
  %v1355 = vunpack.c.l.b16 %v1308
  %v1356 = vunpack.c.l.b16 %v1316
  %v1357 = vld [vmem:[%s3] sm:$0xff]
  %v1358 = vld [vmem:[%s3 + $0x8] sm:$0xff]
  %v1359 = vld [vmem:[%s3 + $0x10] sm:$0xff]
  %v1360 = vld [vmem:[%s3 + $0x18] sm:$0xff]
  %v1361 = vld [vmem:[%s3 + $0x20] sm:$0xff]
  %v1362 = vld [vmem:[%s3 + $0x28] sm:$0xff]
  %v1363 = vld [vmem:[%s3 + $0x30] sm:$0xff]
  %v1364 = vld [vmem:[%s3 + $0x38] sm:$0xff]
  %v1365 = vld [vmem:[%s3 + $0x40] sm:$0xff]
  %v1366 = vld [vmem:[%s3 + $0x48] sm:$0xff]
  %v1367 = vld [vmem:[%s3 + $0x50] sm:$0xff]
  %v1368 = vld [vmem:[%s3 + $0x58] sm:$0xff]
  %v1369 = vld [vmem:[%s3 + $0x60] sm:$0xff]
  %v1370 = vld [vmem:[%s3 + $0x68] sm:$0xff]
  %v1371 = vld [vmem:[%s3 + $0x70] sm:$0xff]
  %v1372 = vld [vmem:[%s3 + $0x78] sm:$0xff]
  %v1373 = vld [vmem:[%s3 + $0x80] sm:$0xff]
  %v1374 = vld [vmem:[%s3 + $0x88] sm:$0xff]
  %v1375 = vld [vmem:[%s3 + $0x90] sm:$0xff]
  %v1376 = vld [vmem:[%s3 + $0x98] sm:$0xff]
  %v1377 = vld [vmem:[%s3 + $0xa0] sm:$0xff]
  %v1378 = vld [vmem:[%s3 + $0xa8] sm:$0xff]
  %v1379 = vld [vmem:[%s3 + $0xb0] sm:$0xff]
  %v1380 = vld [vmem:[%s3 + $0xb8] sm:$0xff]
  %v1381 = vld [vmem:[%s3 + $0xc0] sm:$0xff]
  %v1382 = vld [vmem:[%s3 + $0xc8] sm:$0xff]
  %v1383 = vld [vmem:[%s3 + $0xd0] sm:$0xff]
  %v1384 = vld [vmem:[%s3 + $0xd8] sm:$0xff]
  %v1385 = vld [vmem:[%s3 + $0xe0] sm:$0xff]
  %v1386 = vld [vmem:[%s3 + $0xe8] sm:$0xff]
  %v1387 = vld [vmem:[%s3 + $0xf0] sm:$0xff]
  %v1388 = vld [vmem:[%s3 + $0xf8] sm:$0xff]
  %v1389 = vld [vmem:[%s3 + $0x100] sm:$0xff]
  %v1390 = vld [vmem:[%s3 + $0x108] sm:$0xff]
  %v1391 = vld [vmem:[%s3 + $0x110] sm:$0xff]
  %v1392 = vld [vmem:[%s3 + $0x118] sm:$0xff]
  %v1393 = vld [vmem:[%s3 + $0x120] sm:$0xff]
  %v1394 = vld [vmem:[%s3 + $0x128] sm:$0xff]
  %v1395 = vld [vmem:[%s3 + $0x130] sm:$0xff]
  %v1396 = vld [vmem:[%s3 + $0x138] sm:$0xff]
  %v1397 = vld [vmem:[%s3 + $0x140] sm:$0xff]
  %v1398 = vld [vmem:[%s3 + $0x148] sm:$0xff]
  %v1399 = vld [vmem:[%s3 + $0x150] sm:$0xff]
  %v1400 = vld [vmem:[%s3 + $0x158] sm:$0xff]
  %v1401 = vld [vmem:[%s3 + $0x160] sm:$0xff]
  %v1402 = vld [vmem:[%s3 + $0x168] sm:$0xff]
  %v1403 = vld [vmem:[%s3 + $0x170] sm:$0xff]
  %v1404 = vld [vmem:[%s3 + $0x178] sm:$0xff]
  %v1405 = vld [vmem:[%s3 + $0x180] sm:$0xff]
  %v1406 = vld [vmem:[%s3 + $0x188] sm:$0xff]
  %v1407 = vld [vmem:[%s3 + $0x190] sm:$0xff]
  %v1408 = vld [vmem:[%s3 + $0x198] sm:$0xff]
  %v1409 = vld [vmem:[%s3 + $0x1a0] sm:$0xff]
  %v1410 = vld [vmem:[%s3 + $0x1a8] sm:$0xff]
  %v1411 = vld [vmem:[%s3 + $0x1b0] sm:$0xff]
  %v1412 = vld [vmem:[%s3 + $0x1b8] sm:$0xff]
  %v1413 = vld [vmem:[%s3 + $0x1c0] sm:$0xff]
  %v1414 = vld [vmem:[%s3 + $0x1c8] sm:$0xff]
  %v1415 = vld [vmem:[%s3 + $0x1d0] sm:$0xff]
  %v1416 = vld [vmem:[%s3 + $0x1d8] sm:$0xff]
  %v1417 = vld [vmem:[%s3 + $0x1e0] sm:$0xff]
  %v1418 = vld [vmem:[%s3 + $0x1e8] sm:$0xff]
  %v1419 = vld [vmem:[%s3 + $0x1f0] sm:$0xff]
  %v1420 = vld [vmem:[%s3 + $0x1f8] sm:$0xff]
  %v1421 = vld [vmem:[%s3 + $0x200] sm:$0xff]
  %v1422 = vld [vmem:[%s3 + $0x208] sm:$0xff]
  %v1423 = vld [vmem:[%s3 + $0x210] sm:$0xff]
  %v1424 = vld [vmem:[%s3 + $0x218] sm:$0xff]
  %v1425 = vld [vmem:[%s3 + $0x220] sm:$0xff]
  %v1426 = vld [vmem:[%s3 + $0x228] sm:$0xff]
  %v1427 = vld [vmem:[%s3 + $0x230] sm:$0xff]
  %v1428 = vld [vmem:[%s3 + $0x238] sm:$0xff]
  %v1429 = vld [vmem:[%s3 + $0x240] sm:$0xff]
  %v1430 = vld [vmem:[%s3 + $0x248] sm:$0xff]
  %v1431 = vld [vmem:[%s3 + $0x250] sm:$0xff]
  %v1432 = vld [vmem:[%s3 + $0x258] sm:$0xff]
  %v1433 = vld [vmem:[%s3 + $0x260] sm:$0xff]
  %v1434 = vld [vmem:[%s3 + $0x268] sm:$0xff]
  %v1435 = vld [vmem:[%s3 + $0x270] sm:$0xff]
  %v1436 = vld [vmem:[%s3 + $0x278] sm:$0xff]
  %v1437 = vpack.c.b16 %v1322, %v1317
  %v1438 = vpack.c.b16 %v1323, %v1318
  %v1439 = vpack.c.b16 %v1324, %v1319
  %v1440 = vpack.c.b16 %v1325, %v1320
  %v1441 = vpack.c.b16 %v1326, %v1321
  %v1442 = vpack.c.b16 %v1332, %v1327
  %v1443 = vpack.c.b16 %v1333, %v1328
  %v1444 = vpack.c.b16 %v1334, %v1329
  %v1445 = vpack.c.b16 %v1335, %v1330
  %v1446 = vpack.c.b16 %v1336, %v1331
  %v1447 = vpack.c.b16 %v1342, %v1337
  %v1448 = vpack.c.b16 %v1343, %v1338
  %v1449 = vpack.c.b16 %v1344, %v1339
  %v1450 = vpack.c.b16 %v1345, %v1340
  %v1451 = vpack.c.b16 %v1346, %v1341
  %v1452 = vpack.c.b16 %v1352, %v1347
  %v1453 = vpack.c.b16 %v1353, %v1348
  %v1454 = vpack.c.b16 %v1354, %v1349
  %v1455 = vpack.c.b16 %v1355, %v1350
  %v1456 = vpack.c.b16 %v1356, %v1351
  %v1557 = vunpack.c.l.b16 %v1357
  %v1558 = vunpack.c.h.b16 %v1357
  %v1559 = vunpack.c.l.b16 %v1358
  %v1560 = vunpack.c.h.b16 %v1358
  %v1561 = vunpack.c.l.b16 %v1359
  %v1562 = vunpack.c.h.b16 %v1359
  %v1563 = vunpack.c.l.b16 %v1360
  %v1564 = vunpack.c.h.b16 %v1360
  %v1565 = vunpack.c.l.b16 %v1361
  %v1566 = vunpack.c.h.b16 %v1361
  %v1567 = vunpack.c.l.b16 %v1362
  %v1568 = vunpack.c.h.b16 %v1362
  %v1569 = vunpack.c.l.b16 %v1363
  %v1570 = vunpack.c.h.b16 %v1363
  %v1571 = vunpack.c.l.b16 %v1364
  %v1572 = vunpack.c.h.b16 %v1364
  %v1573 = vunpack.c.l.b16 %v1365
  %v1574 = vunpack.c.h.b16 %v1365
  %v1575 = vunpack.c.l.b16 %v1366
  %v1576 = vunpack.c.h.b16 %v1366
  %v1577 = vunpack.c.l.b16 %v1367
  %v1578 = vunpack.c.h.b16 %v1367
  %v1579 = vunpack.c.l.b16 %v1368
  %v1580 = vunpack.c.h.b16 %v1368
  %v1581 = vunpack.c.l.b16 %v1369
  %v1582 = vunpack.c.h.b16 %v1369
  %v1583 = vunpack.c.l.b16 %v1370
  %v1584 = vunpack.c.h.b16 %v1370
  %v1585 = vunpack.c.l.b16 %v1371
  %v1586 = vunpack.c.h.b16 %v1371
  %v1587 = vunpack.c.l.b16 %v1372
  %v1588 = vunpack.c.h.b16 %v1372
  %v1589 = vunpack.c.l.b16 %v1373
  %v1590 = vunpack.c.h.b16 %v1373
  %v1591 = vunpack.c.l.b16 %v1374
  %v1592 = vunpack.c.h.b16 %v1374
  %v1593 = vunpack.c.l.b16 %v1375
  %v1594 = vunpack.c.h.b16 %v1375
  %v1595 = vunpack.c.l.b16 %v1376
  %v1596 = vunpack.c.h.b16 %v1376
  %v1597 = vunpack.c.l.b16 %v1377
  %v1598 = vunpack.c.h.b16 %v1377
  %v1599 = vunpack.c.l.b16 %v1378
  %v1600 = vunpack.c.h.b16 %v1378
  %v1601 = vunpack.c.l.b16 %v1379
  %v1602 = vunpack.c.h.b16 %v1379
  %v1603 = vunpack.c.l.b16 %v1380
  %v1604 = vunpack.c.h.b16 %v1380
  %v1605 = vunpack.c.l.b16 %v1381
  %v1606 = vunpack.c.h.b16 %v1381
  %v1607 = vunpack.c.l.b16 %v1382
  %v1608 = vunpack.c.h.b16 %v1382
  %v1609 = vunpack.c.l.b16 %v1383
  %v1610 = vunpack.c.h.b16 %v1383
  %v1611 = vunpack.c.l.b16 %v1384
  %v1612 = vunpack.c.h.b16 %v1384
  %v1613 = vunpack.c.l.b16 %v1385
  %v1614 = vunpack.c.h.b16 %v1385
  %v1615 = vunpack.c.l.b16 %v1386
  %v1616 = vunpack.c.h.b16 %v1386
  %v1617 = vunpack.c.l.b16 %v1387
  %v1618 = vunpack.c.h.b16 %v1387
  %v1619 = vunpack.c.l.b16 %v1388
  %v1620 = vunpack.c.h.b16 %v1388
  %v1621 = vunpack.c.l.b16 %v1389
  %v1622 = vunpack.c.h.b16 %v1389
  %v1623 = vunpack.c.l.b16 %v1390
  %v1624 = vunpack.c.h.b16 %v1390
  %v1625 = vunpack.c.l.b16 %v1391
  %v1626 = vunpack.c.h.b16 %v1391
  %v1627 = vunpack.c.l.b16 %v1392
  %v1628 = vunpack.c.h.b16 %v1392
  %v1629 = vunpack.c.l.b16 %v1393
  %v1630 = vunpack.c.h.b16 %v1393
  %v1631 = vunpack.c.l.b16 %v1394
  %v1632 = vunpack.c.h.b16 %v1394
  %v1633 = vunpack.c.l.b16 %v1395
  %v1634 = vunpack.c.h.b16 %v1395
  %v1635 = vunpack.c.l.b16 %v1396
  %v1636 = vunpack.c.h.b16 %v1396
  %v1637 = vunpack.c.l.b16 %v1397
  %v1638 = vunpack.c.h.b16 %v1397
  %v1639 = vunpack.c.l.b16 %v1398
  %v1640 = vunpack.c.h.b16 %v1398
  %v1641 = vunpack.c.l.b16 %v1399
  %v1642 = vunpack.c.h.b16 %v1399
  %v1643 = vunpack.c.l.b16 %v1400
  %v1644 = vunpack.c.h.b16 %v1400
  %v1645 = vunpack.c.l.b16 %v1401
  %v1646 = vunpack.c.h.b16 %v1401
  %v1647 = vunpack.c.l.b16 %v1402
  %v1648 = vunpack.c.h.b16 %v1402
  %v1649 = vunpack.c.l.b16 %v1403
  %v1650 = vunpack.c.h.b16 %v1403
  %v1651 = vunpack.c.l.b16 %v1404
  %v1652 = vunpack.c.h.b16 %v1404
  %v1653 = vunpack.c.l.b16 %v1405
  %v1654 = vunpack.c.h.b16 %v1405
  %v1655 = vunpack.c.l.b16 %v1406
  %v1656 = vunpack.c.h.b16 %v1406
  %v1657 = vunpack.c.l.b16 %v1407
  %v1658 = vunpack.c.h.b16 %v1407
  %v1659 = vunpack.c.l.b16 %v1408
  %v1660 = vunpack.c.h.b16 %v1408
  %v1661 = vunpack.c.l.b16 %v1409
  %v1662 = vunpack.c.h.b16 %v1409
  %v1663 = vunpack.c.l.b16 %v1410
  %v1664 = vunpack.c.h.b16 %v1410
  %v1665 = vunpack.c.l.b16 %v1411
  %v1666 = vunpack.c.h.b16 %v1411
  %v1667 = vunpack.c.l.b16 %v1412
  %v1668 = vunpack.c.h.b16 %v1412
  %v1669 = vunpack.c.l.b16 %v1413
  %v1670 = vunpack.c.h.b16 %v1413
  %v1671 = vunpack.c.l.b16 %v1414
  %v1672 = vunpack.c.h.b16 %v1414
  %v1673 = vunpack.c.l.b16 %v1415
  %v1674 = vunpack.c.h.b16 %v1415
  %v1675 = vunpack.c.l.b16 %v1416
  %v1676 = vunpack.c.h.b16 %v1416
  %v1677 = vunpack.c.l.b16 %v1417
  %v1678 = vunpack.c.h.b16 %v1417
  %v1679 = vunpack.c.l.b16 %v1418
  %v1680 = vunpack.c.h.b16 %v1418
  %v1681 = vunpack.c.l.b16 %v1419
  %v1682 = vunpack.c.h.b16 %v1419
  %v1683 = vunpack.c.l.b16 %v1420
  %v1684 = vunpack.c.h.b16 %v1420
  %v1685 = vunpack.c.l.b16 %v1421
  %v1686 = vunpack.c.h.b16 %v1421
  %v1687 = vunpack.c.l.b16 %v1422
  %v1688 = vunpack.c.h.b16 %v1422
  %v1689 = vunpack.c.l.b16 %v1423
  %v1690 = vunpack.c.h.b16 %v1423
  %v1691 = vunpack.c.l.b16 %v1424
  %v1692 = vunpack.c.h.b16 %v1424
  %v1693 = vunpack.c.l.b16 %v1425
  %v1694 = vunpack.c.h.b16 %v1425
  %v1695 = vunpack.c.l.b16 %v1426
  %v1696 = vunpack.c.h.b16 %v1426
  %v1697 = vunpack.c.l.b16 %v1427
  %v1698 = vunpack.c.h.b16 %v1427
  %v1699 = vunpack.c.l.b16 %v1428
  %v1700 = vunpack.c.h.b16 %v1428
  %v1701 = vunpack.c.l.b16 %v1429
  %v1702 = vunpack.c.h.b16 %v1429
  %v1703 = vunpack.c.l.b16 %v1430
  %v1704 = vunpack.c.h.b16 %v1430
  %v1705 = vunpack.c.l.b16 %v1431
  %v1706 = vunpack.c.h.b16 %v1431
  %v1707 = vunpack.c.l.b16 %v1432
  %v1708 = vunpack.c.h.b16 %v1432
  %v1709 = vunpack.c.l.b16 %v1433
  %v1710 = vunpack.c.h.b16 %v1433
  %v1711 = vunpack.c.l.b16 %v1434
  %v1712 = vunpack.c.h.b16 %v1434
  %v1713 = vunpack.c.l.b16 %v1435
  %v1714 = vunpack.c.h.b16 %v1435
  %v1715 = vunpack.c.l.b16 %v1436
  %v1716 = vunpack.c.h.b16 %v1436
  %v1717 = vpack.c.b16 %v1559, %v1557
  %v1718 = vpack.c.b16 %v1560, %v1558
  %v1719 = vpack.c.b16 %v1563, %v1561
  %v1720 = vpack.c.b16 %v1564, %v1562
  %v1721 = vpack.c.b16 %v1567, %v1565
  %v1722 = vpack.c.b16 %v1568, %v1566
  %v1723 = vpack.c.b16 %v1571, %v1569
  %v1724 = vpack.c.b16 %v1572, %v1570
  %v1725 = vpack.c.b16 %v1575, %v1573
  %v1726 = vpack.c.b16 %v1576, %v1574
  %v1727 = vpack.c.b16 %v1579, %v1577
  %v1728 = vpack.c.b16 %v1580, %v1578
  %v1729 = vpack.c.b16 %v1583, %v1581
  %v1730 = vpack.c.b16 %v1584, %v1582
  %v1731 = vpack.c.b16 %v1587, %v1585
  %v1732 = vpack.c.b16 %v1588, %v1586
  %v1733 = vpack.c.b16 %v1591, %v1589
  %v1734 = vpack.c.b16 %v1592, %v1590
  %v1735 = vpack.c.b16 %v1595, %v1593
  %v1736 = vpack.c.b16 %v1596, %v1594
  %v1737 = vpack.c.b16 %v1599, %v1597
  %v1738 = vpack.c.b16 %v1600, %v1598
  %v1739 = vpack.c.b16 %v1603, %v1601
  %v1740 = vpack.c.b16 %v1604, %v1602
  %v1741 = vpack.c.b16 %v1607, %v1605
  %v1742 = vpack.c.b16 %v1608, %v1606
  %v1743 = vpack.c.b16 %v1611, %v1609
  %v1744 = vpack.c.b16 %v1612, %v1610
  %v1745 = vpack.c.b16 %v1615, %v1613
  %v1746 = vpack.c.b16 %v1616, %v1614
  %v1747 = vpack.c.b16 %v1619, %v1617
  %v1748 = vpack.c.b16 %v1620, %v1618
  %v1749 = vpack.c.b16 %v1623, %v1621
  %v1750 = vpack.c.b16 %v1624, %v1622
  %v1751 = vpack.c.b16 %v1627, %v1625
  %v1752 = vpack.c.b16 %v1628, %v1626
  %v1753 = vpack.c.b16 %v1631, %v1629
  %v1754 = vpack.c.b16 %v1632, %v1630
  %v1755 = vpack.c.b16 %v1635, %v1633
  %v1756 = vpack.c.b16 %v1636, %v1634
  %v1757 = vpack.c.b16 %v1639, %v1637
  %v1758 = vpack.c.b16 %v1640, %v1638
  %v1759 = vpack.c.b16 %v1643, %v1641
  %v1760 = vpack.c.b16 %v1644, %v1642
  %v1761 = vpack.c.b16 %v1647, %v1645
  %v1762 = vpack.c.b16 %v1648, %v1646
  %v1763 = vpack.c.b16 %v1651, %v1649
  %v1764 = vpack.c.b16 %v1652, %v1650
  %v1765 = vpack.c.b16 %v1655, %v1653
  %v1766 = vpack.c.b16 %v1656, %v1654
  %v1767 = vpack.c.b16 %v1659, %v1657
  %v1768 = vpack.c.b16 %v1660, %v1658
  %v1769 = vpack.c.b16 %v1663, %v1661
  %v1770 = vpack.c.b16 %v1664, %v1662
  %v1771 = vpack.c.b16 %v1667, %v1665
  %v1772 = vpack.c.b16 %v1668, %v1666
  %v1773 = vpack.c.b16 %v1671, %v1669
  %v1774 = vpack.c.b16 %v1672, %v1670
  %v1775 = vpack.c.b16 %v1675, %v1673
  %v1776 = vpack.c.b16 %v1676, %v1674
  %v1777 = vpack.c.b16 %v1679, %v1677
  %v1778 = vpack.c.b16 %v1680, %v1678
  %v1779 = vpack.c.b16 %v1683, %v1681
  %v1780 = vpack.c.b16 %v1684, %v1682
  %v1781 = vpack.c.b16 %v1687, %v1685
  %v1782 = vpack.c.b16 %v1688, %v1686
  %v1783 = vpack.c.b16 %v1691, %v1689
  %v1784 = vpack.c.b16 %v1692, %v1690
  %v1785 = vpack.c.b16 %v1695, %v1693
  %v1786 = vpack.c.b16 %v1696, %v1694
  %v1787 = vpack.c.b16 %v1699, %v1697
  %v1788 = vpack.c.b16 %v1700, %v1698
  %v1789 = vpack.c.b16 %v1703, %v1701
  %v1790 = vpack.c.b16 %v1704, %v1702
  %v1791 = vpack.c.b16 %v1707, %v1705
  %v1792 = vpack.c.b16 %v1708, %v1706
  %v1793 = vpack.c.b16 %v1711, %v1709
  %v1794 = vpack.c.b16 %v1712, %v1710
  %v1795 = vpack.c.b16 %v1715, %v1713
  %v1796 = vpack.c.b16 %v1716, %v1714
  %1877 = vmatprep.subr.bf16.mxu0 %v1718
  %1878 = vmatpush1.bf16.msra.mxu0 %v1717
  %1879 = vmatprep.subr.bf16.mxu0 %v1720
  %1880 = vmatpush1.bf16.msra.mxu0 %v1719
  %1881 = vmatprep.subr.bf16.mxu0 %v1722
  %1882 = vmatpush1.bf16.msra.mxu0 %v1721
  %1883 = vmatprep.subr.bf16.mxu0 %v1724
  %1884 = vmatpush1.bf16.msra.mxu0 %v1723
  %1885 = vmatprep.subr.bf16.mxu0 %v1726
  %1886 = vmatpush1.bf16.msra.mxu0 %v1725
  %1887 = vmatprep.subr.bf16.mxu0 %v1728
  %1888 = vmatpush1.bf16.msra.mxu0 %v1727
  %1889 = vmatprep.subr.bf16.mxu0 %v1730
  %1890 = vmatpush1.bf16.msra.mxu0 %v1729
  %1891 = vmatprep.subr.bf16.mxu0 %v1732
  %1892 = vmatpush1.bf16.msra.mxu0 %v1731
  %1893 = vmatprep.subr.bf16.mxu0 %v1734
  %1894 = vmatpush1.bf16.msra.mxu0 %v1733
  %1895 = vmatprep.subr.bf16.mxu0 %v1736
  %1896 = vmatpush1.bf16.msra.mxu0 %v1735
  %1897 = vmatprep.subr.bf16.mxu0 %v1738
  %1898 = vmatpush1.bf16.msra.mxu0 %v1737
  %1899 = vmatprep.subr.bf16.mxu0 %v1740
  %1900 = vmatpush1.bf16.msra.mxu0 %v1739
  %1901 = vmatprep.subr.bf16.mxu0 %v1742
  %1902 = vmatpush1.bf16.msra.mxu0 %v1741
  %1903 = vmatprep.subr.bf16.mxu0 %v1744
  %1904 = vmatpush1.bf16.msra.mxu0 %v1743
  %1905 = vmatprep.subr.bf16.mxu0 %v1746
  %1906 = vmatpush1.bf16.msra.mxu0 %v1745
  %1907 = vmatprep.subr.bf16.mxu0 %v1748
  %1908 = vmatpush1.bf16.msra.mxu0 %v1747
  %1909 = vmatprep.mubr.bf16.mxu0 %v1438
  %1910 = vmatmul.mubr.bf16.gmra.mrb[0].mxu0 %v1437
  %v1911 = vpop.f32.mrb[0].mxu0
  %v1912 = vadd.f32 0.0, %v1911
  %v1913 = vpop.f32.mrb[0].mxu0
  %v1914 = vadd.f32 0.0, %v1913
  %v1915 = vpop.f32.mrb[0].mxu0
  %v1916 = vadd.f32 0.0, %v1915
  %v1917 = vpop.f32.mrb[0].mxu0
  %v1918 = vadd.f32 0.0, %v1917
  %1919 = vmatprep.mubr.bf16.mxu0 %v1443
  %1920 = vmatmul.mubr.bf16.gmra.mrb[0].mxu0 %v1442
  %v1921 = vpop.f32.mrb[0].mxu0
  %v1922 = vadd.f32 0.0, %v1921
  %v1923 = vpop.f32.mrb[0].mxu0
  %v1924 = vadd.f32 0.0, %v1923
  %v1925 = vpop.f32.mrb[0].mxu0
  %v1926 = vadd.f32 0.0, %v1925
  %v1927 = vpop.f32.mrb[0].mxu0
  %v1928 = vadd.f32 0.0, %v1927
  %1929 = vmatprep.mubr.bf16.mxu0 %v1448
  %1930 = vmatmul.mubr.bf16.gmra.mrb[0].mxu0 %v1447
  %v1931 = vpop.f32.mrb[0].mxu0
  %v1932 = vadd.f32 0.0, %v1931
  %v1933 = vpop.f32.mrb[0].mxu0
  %v1934 = vadd.f32 0.0, %v1933
  %v1935 = vpop.f32.mrb[0].mxu0
  %v1936 = vadd.f32 0.0, %v1935
  %v1937 = vpop.f32.mrb[0].mxu0
  %v1938 = vadd.f32 0.0, %v1937
  %1939 = vmatprep.mubr.bf16.mxu0 %v1453
  %1940 = vmatmul.mubr.bf16.gmra.mrb[0].mxu0 %v1452
  %v1941 = vpop.f32.mrb[0].mxu0
  %v1942 = vadd.f32 0.0, %v1941
  %v1943 = vpop.f32.mrb[0].mxu0
  %v1944 = vadd.f32 0.0, %v1943
  %v1945 = vpop.f32.mrb[0].mxu0
  %v1946 = vadd.f32 0.0, %v1945
  %v1947 = vpop.f32.mrb[0].mxu0
  %v1948 = vadd.f32 0.0, %v1947
  %1949 = vdwg.mxu0
  %1950 = vmatprep.subr.bf16.mxu0 %v1750
  %1951 = vmatpush1.bf16.msra.mxu0 %v1749
  %1952 = vmatprep.subr.bf16.mxu0 %v1752
  %1953 = vmatpush1.bf16.msra.mxu0 %v1751
  %1954 = vmatprep.subr.bf16.mxu0 %v1754
  %1955 = vmatpush1.bf16.msra.mxu0 %v1753
  %1956 = vmatprep.subr.bf16.mxu0 %v1756
  %1957 = vmatpush1.bf16.msra.mxu0 %v1755
  %1958 = vmatprep.subr.bf16.mxu0 %v1758
  %1959 = vmatpush1.bf16.msra.mxu0 %v1757
  %1960 = vmatprep.subr.bf16.mxu0 %v1760
  %1961 = vmatpush1.bf16.msra.mxu0 %v1759
  %1962 = vmatprep.subr.bf16.mxu0 %v1762
  %1963 = vmatpush1.bf16.msra.mxu0 %v1761
  %1964 = vmatprep.subr.bf16.mxu0 %v1764
  %1965 = vmatpush1.bf16.msra.mxu0 %v1763
  %1966 = vmatprep.subr.bf16.mxu0 %v1766
  %1967 = vmatpush1.bf16.msra.mxu0 %v1765
  %1968 = vmatprep.subr.bf16.mxu0 %v1768
  %1969 = vmatpush1.bf16.msra.mxu0 %v1767
  %1970 = vmatprep.subr.bf16.mxu0 %v1770
  %1971 = vmatpush1.bf16.msra.mxu0 %v1769
  %1972 = vmatprep.subr.bf16.mxu0 %v1772
  %1973 = vmatpush1.bf16.msra.mxu0 %v1771
  %1974 = vmatprep.subr.bf16.mxu0 %v1774
  %1975 = vmatpush1.bf16.msra.mxu0 %v1773
  %1976 = vmatprep.subr.bf16.mxu0 %v1776
  %1977 = vmatpush1.bf16.msra.mxu0 %v1775
  %1978 = vmatprep.subr.bf16.mxu0 %v1778
  %1979 = vmatpush1.bf16.msra.mxu0 %v1777
  %1980 = vmatprep.subr.bf16.mxu0 %v1780
  %1981 = vmatpush1.bf16.msra.mxu0 %v1779
  %1982 = vmatprep.mubr.bf16.mxu0 %v1440
  %1983 = vmatmul.mubr.bf16.gmra.mrb[0].mxu0 %v1439
  %v1984 = vpop.f32.mrb[0].mxu0
  %v1985 = vadd.f32 %v1912, %v1984
  %v1986 = vpop.f32.mrb[0].mxu0
  %v1987 = vadd.f32 %v1914, %v1986
  %v1988 = vpop.f32.mrb[0].mxu0
  %v1989 = vadd.f32 %v1916, %v1988
  %v1990 = vpop.f32.mrb[0].mxu0
  %v1991 = vadd.f32 %v1918, %v1990
  %1992 = vmatprep.mubr.bf16.mxu0 %v1445
  %1993 = vmatmul.mubr.bf16.gmra.mrb[0].mxu0 %v1444
  %v1994 = vpop.f32.mrb[0].mxu0
  %v1995 = vadd.f32 %v1922, %v1994
  %v1996 = vpop.f32.mrb[0].mxu0
  %v1997 = vadd.f32 %v1924, %v1996
  %v1998 = vpop.f32.mrb[0].mxu0
  %v1999 = vadd.f32 %v1926, %v1998
  %v2000 = vpop.f32.mrb[0].mxu0
  %v2001 = vadd.f32 %v1928, %v2000
  %2002 = vmatprep.mubr.bf16.mxu0 %v1450
  %2003 = vmatmul.mubr.bf16.gmra.mrb[0].mxu0 %v1449
  %v2004 = vpop.f32.mrb[0].mxu0
  %v2005 = vadd.f32 %v1932, %v2004
  %v2006 = vpop.f32.mrb[0].mxu0
  %v2007 = vadd.f32 %v1934, %v2006
  %v2008 = vpop.f32.mrb[0].mxu0
  %v2009 = vadd.f32 %v1936, %v2008
  %v2010 = vpop.f32.mrb[0].mxu0
  %v2011 = vadd.f32 %v1938, %v2010
  %2012 = vmatprep.mubr.bf16.mxu0 %v1455
  %2013 = vmatmul.mubr.bf16.gmra.mrb[0].mxu0 %v1454
  %v2014 = vpop.f32.mrb[0].mxu0
  %v2015 = vadd.f32 %v1942, %v2014
  %v2016 = vpop.f32.mrb[0].mxu0
  %v2017 = vadd.f32 %v1944, %v2016
  %v2018 = vpop.f32.mrb[0].mxu0
  %v2019 = vadd.f32 %v1946, %v2018
  %v2020 = vpop.f32.mrb[0].mxu0
  %v2021 = vadd.f32 %v1948, %v2020
  %2022 = vdwg.mxu0
  %2023 = vmatprep.subr.bf16.mxu0 %v1782
  %2024 = vmatpush1.bf16.msra.mxu0 %v1781
  %2025 = vmatprep.subr.bf16.mxu0 %v1784
  %2026 = vmatpush1.bf16.msra.mxu0 %v1783
  %2027 = vmatprep.subr.bf16.mxu0 %v1786
  %2028 = vmatpush1.bf16.msra.mxu0 %v1785
  %2029 = vmatprep.subr.bf16.mxu0 %v1788
  %2030 = vmatpush1.bf16.msra.mxu0 %v1787
  %2031 = vmatprep.subr.bf16.mxu0 %v1790
  %2032 = vmatpush1.bf16.msra.mxu0 %v1789
  %2033 = vmatprep.subr.bf16.mxu0 %v1792
  %2034 = vmatpush1.bf16.msra.mxu0 %v1791
  %2035 = vmatprep.subr.bf16.mxu0 %v1794
  %2036 = vmatpush1.bf16.msra.mxu0 %v1793
  %2037 = vmatprep.subr.bf16.mxu0 %v1796
  %2038 = vmatpush1.bf16.msra.mxu0 %v1795
  %2039 = vmatprep.subr.bf16.mxu0 0
  %2040 = vmatpush1.bf16.msra.mxu0 0
  %2041 = vmatprep.subr.bf16.mxu0 0
  %2042 = vmatpush1.bf16.msra.mxu0 0
  %2043 = vmatprep.subr.bf16.mxu0 0
  %2044 = vmatpush1.bf16.msra.mxu0 0
  %2045 = vmatprep.subr.bf16.mxu0 0
  %2046 = vmatpush1.bf16.msra.mxu0 0
  %2047 = vmatprep.subr.bf16.mxu0 0
  %2048 = vmatpush1.bf16.msra.mxu0 0
  %2049 = vmatprep.subr.bf16.mxu0 0
  %2050 = vmatpush1.bf16.msra.mxu0 0
  %2051 = vmatprep.subr.bf16.mxu0 0
  %2052 = vmatpush1.bf16.msra.mxu0 0
  %2053 = vmatprep.subr.bf16.mxu0 0
  %2054 = vmatpush1.bf16.msra.mxu0 0
  %2055 = vmatprep.mubr.bf16.mxu0 0
  %2056 = vmatmul.mubr.bf16.gmra.mrb[0].mxu0 %v1441
  %v2057 = vpop.f32.mrb[0].mxu0
  %v2058 = vadd.f32 %v1985, %v2057
  %v2059 = vpop.f32.mrb[0].mxu0
  %v2060 = vadd.f32 %v1987, %v2059
  %v2061 = vpop.f32.mrb[0].mxu0
  %v2062 = vadd.f32 %v1989, %v2061
  %v2063 = vpop.f32.mrb[0].mxu0
  %v2064 = vadd.f32 %v1991, %v2063
  %2065 = vmatprep.mubr.bf16.mxu0 0
  %2066 = vmatmul.mubr.bf16.gmra.mrb[0].mxu0 %v1446
  %v2067 = vpop.f32.mrb[0].mxu0
  %v2068 = vadd.f32 %v1995, %v2067
  %v2069 = vpop.f32.mrb[0].mxu0
  %v2070 = vadd.f32 %v1997, %v2069
  %v2071 = vpop.f32.mrb[0].mxu0
  %v2072 = vadd.f32 %v1999, %v2071
  %v2073 = vpop.f32.mrb[0].mxu0
  %v2074 = vadd.f32 %v2001, %v2073
  %2075 = vmatprep.mubr.bf16.mxu0 0
  %2076 = vmatmul.mubr.bf16.gmra.mrb[0].mxu0 %v1451
  %v2077 = vpop.f32.mrb[0].mxu0
  %v2078 = vadd.f32 %v2005, %v2077
  %v2079 = vpop.f32.mrb[0].mxu0
  %v2080 = vadd.f32 %v2007, %v2079
  %v2081 = vpop.f32.mrb[0].mxu0
  %v2082 = vadd.f32 %v2009, %v2081
  %v2083 = vpop.f32.mrb[0].mxu0
  %v2084 = vadd.f32 %v2011, %v2083
  %2085 = vmatprep.mubr.bf16.mxu0 0
  %2086 = vmatmul.mubr.bf16.gmra.mrb[0].mxu0 %v1456
  %v2087 = vpop.f32.mrb[0].mxu0
  %v2088 = vadd.f32 %v2015, %v2087
  %v2089 = vpop.f32.mrb[0].mxu0
  %v2090 = vadd.f32 %v2017, %v2089
  %v2091 = vpop.f32.mrb[0].mxu0
  %v2092 = vadd.f32 %v2019, %v2091
  %v2093 = vpop.f32.mrb[0].mxu0
  %v2094 = vadd.f32 %v2021, %v2093
  %2095 = vdwg.mxu0
  %v2096 = vmax.f32 %v2058, %v2060
  %v2097 = vmax.f32 %v2062, %v2064
  %v2098 = vmax.f32 %v2068, %v2070
  %v2099 = vmax.f32 %v2072, %v2074
  %v2100 = vmax.f32 %v2078, %v2080
  %v2101 = vmax.f32 %v2082, %v2084
  %v2102 = vmax.f32 %v2088, %v2090
  %v2103 = vmax.f32 %v2092, %v2094
  %2104 = vst [vmem:[#allocation3] sm:$0xff] %v2096
  %2105 = vst [vmem:[#allocation3 + $0x8] sm:$0xff] %v2097
  %2106 = vst [vmem:[#allocation3 + $0x10] sm:$0xff] %v2098
  %2107 = vst [vmem:[#allocation3 + $0x18] sm:$0xff] %v2099
  %2108 = vst [vmem:[#allocation3 + $0x20] sm:$0xff] %v2100
  %2109 = vst [vmem:[#allocation3 + $0x28] sm:$0xff] %v2101
  %2110 = vst [vmem:[#allocation3 + $0x30] sm:$0xff] %v2102
  %2111 = vst [vmem:[#allocation3 + $0x38] sm:$0xff] %v2103
  %v2112 = vld [vmem:[#allocation3] ss:$2 sm:$0xf]
  %s2113 = scalar_lea.vmem [#allocation3], 8
  %v2114 = vld [vmem:[%s2113] ss:$2 sm:$0xf]
  %s2115 = scalar_lea.vmem [#allocation3], 16
  %v2116 = vld [vmem:[%s2115] ss:$2 sm:$0xf]
  %s2117 = scalar_lea.vmem [#allocation3], 24
  %v2118 = vld [vmem:[%s2117] ss:$2 sm:$0xf]
  %s2119 = scalar_lea.vmem [#allocation3], 32
  %v2120 = vld [vmem:[%s2119] ss:$2 sm:$0xf]
  %s2121 = scalar_lea.vmem [#allocation3], 40
  %v2122 = vld [vmem:[%s2121] ss:$2 sm:$0xf]
  %s2123 = scalar_lea.vmem [#allocation3], 48
  %v2124 = vld [vmem:[%s2123] ss:$2 sm:$0xf]
  %s2125 = scalar_lea.vmem [#allocation3], 56
  %v2126 = vld [vmem:[%s2125] ss:$2 sm:$0xf]
  %s2127 = scalar_lea.vmem [#allocation3], 1
  %v2128 = vld [vmem:[%s2127] ss:$2 sm:$0xf]
  %s2129 = scalar_lea.vmem [#allocation3], 9
  %v2130 = vld [vmem:[%s2129] ss:$2 sm:$0xf]
  %s2131 = scalar_lea.vmem [#allocation3], 17
  %v2132 = vld [vmem:[%s2131] ss:$2 sm:$0xf]
  %s2133 = scalar_lea.vmem [#allocation3], 25
  %v2134 = vld [vmem:[%s2133] ss:$2 sm:$0xf]
  %s2135 = scalar_lea.vmem [#allocation3], 33
  %v2136 = vld [vmem:[%s2135] ss:$2 sm:$0xf]
  %s2137 = scalar_lea.vmem [#allocation3], 41
  %v2138 = vld [vmem:[%s2137] ss:$2 sm:$0xf]
  %s2139 = scalar_lea.vmem [#allocation3], 49
  %v2140 = vld [vmem:[%s2139] ss:$2 sm:$0xf]
  %s2141 = scalar_lea.vmem [#allocation3], 57
  %v2142 = vld [vmem:[%s2141] ss:$2 sm:$0xf]
  %v2143 = vmax.f32 %v2112, %v2128
  %v2144 = vmax.f32 %v2114, %v2130
  %v2145 = vmax.f32 %v2116, %v2132
  %v2146 = vmax.f32 %v2118, %v2134
  %v2147 = vmax.f32 %v2120, %v2136
  %v2148 = vmax.f32 %v2122, %v2138
  %v2149 = vmax.f32 %v2124, %v2140
  %v2150 = vmax.f32 %v2126, %v2142
  %v2151 = vld [vmem:[%s4] sm:$0x1]
  %v2153 = vlaneseq
  %v2154 = vshrl.u32 %v2153, 7
  %v2155 = vsub.s32 0, %v2154
  %v2156 = vrot.slane %v2151, %v2155
  %v2158 = vadd.f32 %v2143, %v2156
  %v2159 = vadd.f32 %v2144, %v2156
  %v2160 = vadd.f32 %v2145, %v2156
  %v2161 = vadd.f32 %v2146, %v2156
  %v2162 = vadd.f32 %v2147, %v2156
  %v2163 = vadd.f32 %v2148, %v2156
  %v2164 = vadd.f32 %v2149, %v2156
  %v2165 = vadd.f32 %v2150, %v2156
  %v2166 = vmax.f32 %v2158, 0.0
  %v2167 = vmax.f32 %v2159, 0.0
  %v2168 = vmax.f32 %v2160, 0.0
  %v2169 = vmax.f32 %v2161, 0.0
  %v2170 = vmax.f32 %v2162, 0.0
  %v2171 = vmax.f32 %v2163, 0.0
  %v2172 = vmax.f32 %v2164, 0.0
  %v2173 = vmax.f32 %v2165, 0.0
  %v2174 = vpack.c.bf16 %v2166, %v2166
  %v2175 = vpack.c.bf16 %v2167, %v2167
  %v2176 = vpack.c.bf16 %v2168, %v2168
  %v2177 = vpack.c.bf16 %v2169, %v2169
  %v2178 = vpack.c.bf16 %v2170, %v2170
  %v2179 = vpack.c.bf16 %v2171, %v2171
  %v2180 = vpack.c.bf16 %v2172, %v2172
  %v2181 = vpack.c.bf16 %v2173, %v2173
  %v2190 = vunpack.c.l.b16 %v2174
  %v2191 = vunpack.c.l.b16 %v2175
  %v2192 = vunpack.c.l.b16 %v2176
  %v2193 = vunpack.c.l.b16 %v2177
  %v2194 = vunpack.c.l.b16 %v2178
  %v2195 = vunpack.c.l.b16 %v2179
  %v2196 = vunpack.c.l.b16 %v2180
  %v2197 = vunpack.c.l.b16 %v2181
  %v2198 = vrot.slane %v2191, 7
  %vm2199 = vcmask 1041409
  %v2200 = vsel %vm2199, %v2198, %v2190
  %v2201 = vrot.slane %v2192, 6
  %vm2202 = vcmask 1042434
  %v2203 = vsel %vm2202, %v2201, %v2200
  %v2204 = vrot.slane %v2193, 5
  %vm2205 = vcmask 1043459
  %v2206 = vsel %vm2205, %v2204, %v2203
  %v2207 = vrot.slane %v2194, 4
  %vm2208 = vcmask 1044484
  %v2209 = vsel %vm2208, %v2207, %v2206
  %v2210 = vrot.slane %v2195, 3
  %vm2211 = vcmask 1045509
  %v2212 = vsel %vm2211, %v2210, %v2209
  %v2213 = vrot.slane %v2196, 2
  %vm2214 = vcmask 1046534
  %v2215 = vsel %vm2214, %v2213, %v2212
  %v2216 = vrot.slane %v2197, 1
  %vm2217 = vcmask 1047559
  %v2218 = vsel %vm2217, %v2216, %v2215
  %v2219 = vpack.c.b16 %v2218, %v2218
  %v2221 = vrot.slane %v2190, 1
  %v2222 = vsel %vm2199, %v2191, %v2221
  %v2223 = vrot.slane %v2192, 7
  %v2224 = vsel %vm2202, %v2223, %v2222
  %v2225 = vrot.slane %v2193, 6
  %v2226 = vsel %vm2205, %v2225, %v2224
  %v2227 = vrot.slane %v2194, 5
  %v2228 = vsel %vm2208, %v2227, %v2226
  %v2229 = vrot.slane %v2195, 4
  %v2230 = vsel %vm2211, %v2229, %v2228
  %v2231 = vrot.slane %v2196, 3
  %v2232 = vsel %vm2214, %v2231, %v2230
  %v2233 = vrot.slane %v2197, 2
  %v2234 = vsel %vm2217, %v2233, %v2232
  %v2235 = vpack.c.b16 %v2234, %v2234
  %v2237 = vrot.slane %v2190, 2
  %v2238 = vrot.slane %v2191, 1
  %v2239 = vsel %vm2199, %v2238, %v2237
  %v2240 = vsel %vm2202, %v2192, %v2239
  %v2241 = vrot.slane %v2193, 7
  %v2242 = vsel %vm2205, %v2241, %v2240
  %v2243 = vrot.slane %v2194, 6
  %v2244 = vsel %vm2208, %v2243, %v2242
  %v2245 = vrot.slane %v2195, 5
  %v2246 = vsel %vm2211, %v2245, %v2244
  %v2247 = vrot.slane %v2196, 4
  %v2248 = vsel %vm2214, %v2247, %v2246
  %v2249 = vrot.slane %v2197, 3
  %v2250 = vsel %vm2217, %v2249, %v2248
  %v2251 = vpack.c.b16 %v2250, %v2250
  %v2253 = vrot.slane %v2190, 3
  %v2254 = vrot.slane %v2191, 2
  %v2255 = vsel %vm2199, %v2254, %v2253
  %v2256 = vrot.slane %v2192, 1
  %v2257 = vsel %vm2202, %v2256, %v2255
  %v2258 = vsel %vm2205, %v2193, %v2257
  %v2259 = vrot.slane %v2194, 7
  %v2260 = vsel %vm2208, %v2259, %v2258
  %v2261 = vrot.slane %v2195, 6
  %v2262 = vsel %vm2211, %v2261, %v2260
  %v2263 = vrot.slane %v2196, 5
  %v2264 = vsel %vm2214, %v2263, %v2262
  %v2265 = vrot.slane %v2197, 4
  %v2266 = vsel %vm2217, %v2265, %v2264
  %v2267 = vpack.c.b16 %v2266, %v2266
  %v2269 = vld [vmem:[%s5] sm:$0xf]
  %v2270 = vld [vmem:[%s5 + $0x4] sm:$0xf]
  %v2271 = vld [vmem:[%s5 + $0x8] sm:$0xf]
  %v2272 = vld [vmem:[%s5 + $0xc] sm:$0xf]
  %v2273 = vld [vmem:[%s5 + $0x10] sm:$0xf]
  %v2274 = vld [vmem:[%s5 + $0x14] sm:$0xf]
  %v2275 = vld [vmem:[%s5 + $0x18] sm:$0xf]
  %v2276 = vld [vmem:[%s5 + $0x1c] sm:$0xf]
  %v2277 = vld [vmem:[%s5 + $0x20] sm:$0xf]
  %v2278 = vld [vmem:[%s5 + $0x24] sm:$0xf]
  %v2279 = vld [vmem:[%s5 + $0x28] sm:$0xf]
  %v2280 = vld [vmem:[%s5 + $0x2c] sm:$0xf]
  %v2281 = vld [vmem:[%s5 + $0x30] sm:$0xf]
  %v2282 = vld [vmem:[%s5 + $0x34] sm:$0xf]
  %v2283 = vld [vmem:[%s5 + $0x38] sm:$0xf]
  %v2284 = vld [vmem:[%s5 + $0x3c] sm:$0xf]
  %v2285 = vld [vmem:[%s5 + $0x40] sm:$0xf]
  %v2286 = vld [vmem:[%s5 + $0x44] sm:$0xf]
  %v2287 = vld [vmem:[%s5 + $0x48] sm:$0xf]
  %v2288 = vld [vmem:[%s5 + $0x4c] sm:$0xf]
  %v2289 = vld [vmem:[%s5 + $0x50] sm:$0xf]
  %v2290 = vld [vmem:[%s5 + $0x54] sm:$0xf]
  %v2291 = vld [vmem:[%s5 + $0x58] sm:$0xf]
  %v2292 = vld [vmem:[%s5 + $0x5c] sm:$0xf]
  %v2293 = vld [vmem:[%s5 + $0x60] sm:$0xf]
  %v2294 = vld [vmem:[%s5 + $0x64] sm:$0xf]
  %v2295 = vld [vmem:[%s5 + $0x68] sm:$0xf]
  %v2296 = vld [vmem:[%s5 + $0x6c] sm:$0xf]
  %v2297 = vld [vmem:[%s5 + $0x70] sm:$0xf]
  %v2298 = vld [vmem:[%s5 + $0x74] sm:$0xf]
  %v2299 = vld [vmem:[%s5 + $0x78] sm:$0xf]
  %v2300 = vld [vmem:[%s5 + $0x7c] sm:$0xf]
  %v2301 = vld [vmem:[%s5 + $0x80] sm:$0xf]
  %v2302 = vld [vmem:[%s5 + $0x84] sm:$0xf]
  %v2303 = vld [vmem:[%s5 + $0x88] sm:$0xf]
  %v2304 = vld [vmem:[%s5 + $0x8c] sm:$0xf]
  %v2305 = vld [vmem:[%s5 + $0x90] sm:$0xf]
  %v2306 = vld [vmem:[%s5 + $0x94] sm:$0xf]
  %v2307 = vld [vmem:[%s5 + $0x98] sm:$0xf]
  %v2308 = vld [vmem:[%s5 + $0x9c] sm:$0xf]
  %v2309 = vld [vmem:[%s5 + $0xa0] sm:$0xf]
  %v2310 = vld [vmem:[%s5 + $0xa4] sm:$0xf]
  %v2311 = vld [vmem:[%s5 + $0xa8] sm:$0xf]
  %v2312 = vld [vmem:[%s5 + $0xac] sm:$0xf]
  %v2313 = vld [vmem:[%s5 + $0xb0] sm:$0xf]
  %v2314 = vld [vmem:[%s5 + $0xb4] sm:$0xf]
  %v2315 = vld [vmem:[%s5 + $0xb8] sm:$0xf]
  %v2316 = vld [vmem:[%s5 + $0xbc] sm:$0xf]
  %v2317 = vld [vmem:[%s5 + $0xc0] sm:$0xf]
  %v2318 = vld [vmem:[%s5 + $0xc4] sm:$0xf]
  %v2319 = vld [vmem:[%s5 + $0xc8] sm:$0xf]
  %v2320 = vld [vmem:[%s5 + $0xcc] sm:$0xf]
  %v2321 = vld [vmem:[%s5 + $0xd0] sm:$0xf]
  %v2322 = vld [vmem:[%s5 + $0xd4] sm:$0xf]
  %v2323 = vld [vmem:[%s5 + $0xd8] sm:$0xf]
  %v2324 = vld [vmem:[%s5 + $0xdc] sm:$0xf]
  %v2325 = vld [vmem:[%s5 + $0xe0] sm:$0xf]
  %v2326 = vld [vmem:[%s5 + $0xe4] sm:$0xf]
  %v2327 = vld [vmem:[%s5 + $0xe8] sm:$0xf]
  %v2328 = vld [vmem:[%s5 + $0xec] sm:$0xf]
  %v2329 = vld [vmem:[%s5 + $0xf0] sm:$0xf]
  %v2330 = vld [vmem:[%s5 + $0xf4] sm:$0xf]
  %v2331 = vld [vmem:[%s5 + $0xf8] sm:$0xf]
  %v2332 = vld [vmem:[%s5 + $0xfc] sm:$0xf]
  %v2333 = vld [vmem:[%s6] sm:$0x1]
  %v2335 = vlaneseq
  %v2336 = vshrl.u32 %v2335, 7
  %v2337 = vsub.s32 0, %v2336
  %v2338 = vrot.slane %v2333, %v2337
  %v2404 = vunpack.c.l.b16 %v2269
  %v2405 = vunpack.c.l.b16 %v2270
  %v2406 = vunpack.c.l.b16 %v2271
  %v2407 = vunpack.c.l.b16 %v2272
  %v2408 = vunpack.c.l.b16 %v2273
  %v2409 = vunpack.c.l.b16 %v2274
  %v2410 = vunpack.c.l.b16 %v2275
  %v2411 = vunpack.c.l.b16 %v2276
  %v2412 = vunpack.c.l.b16 %v2277
  %v2413 = vunpack.c.l.b16 %v2278
  %v2414 = vunpack.c.l.b16 %v2279
  %v2415 = vunpack.c.l.b16 %v2280
  %v2416 = vunpack.c.l.b16 %v2281
  %v2417 = vunpack.c.l.b16 %v2282
  %v2418 = vunpack.c.l.b16 %v2283
  %v2419 = vunpack.c.l.b16 %v2284
  %v2420 = vunpack.c.l.b16 %v2285
  %v2421 = vunpack.c.l.b16 %v2286
  %v2422 = vunpack.c.l.b16 %v2287
  %v2423 = vunpack.c.l.b16 %v2288
  %v2424 = vunpack.c.l.b16 %v2289
  %v2425 = vunpack.c.l.b16 %v2290
  %v2426 = vunpack.c.l.b16 %v2291
  %v2427 = vunpack.c.l.b16 %v2292
  %v2428 = vunpack.c.l.b16 %v2293
  %v2429 = vunpack.c.l.b16 %v2294
  %v2430 = vunpack.c.l.b16 %v2295
  %v2431 = vunpack.c.l.b16 %v2296
  %v2432 = vunpack.c.l.b16 %v2297
  %v2433 = vunpack.c.l.b16 %v2298
  %v2434 = vunpack.c.l.b16 %v2299
  %v2435 = vunpack.c.l.b16 %v2300
  %v2436 = vunpack.c.l.b16 %v2301
  %v2437 = vunpack.c.l.b16 %v2302
  %v2438 = vunpack.c.l.b16 %v2303
  %v2439 = vunpack.c.l.b16 %v2304
  %v2440 = vunpack.c.l.b16 %v2305
  %v2441 = vunpack.c.l.b16 %v2306
  %v2442 = vunpack.c.l.b16 %v2307
  %v2443 = vunpack.c.l.b16 %v2308
  %v2444 = vunpack.c.l.b16 %v2309
  %v2445 = vunpack.c.l.b16 %v2310
  %v2446 = vunpack.c.l.b16 %v2311
  %v2447 = vunpack.c.l.b16 %v2312
  %v2448 = vunpack.c.l.b16 %v2313
  %v2449 = vunpack.c.l.b16 %v2314
  %v2450 = vunpack.c.l.b16 %v2315
  %v2451 = vunpack.c.l.b16 %v2316
  %v2452 = vunpack.c.l.b16 %v2317
  %v2453 = vunpack.c.l.b16 %v2318
  %v2454 = vunpack.c.l.b16 %v2319
  %v2455 = vunpack.c.l.b16 %v2320
  %v2456 = vunpack.c.l.b16 %v2321
  %v2457 = vunpack.c.l.b16 %v2322
  %v2458 = vunpack.c.l.b16 %v2323
  %v2459 = vunpack.c.l.b16 %v2324
  %v2460 = vunpack.c.l.b16 %v2325
  %v2461 = vunpack.c.l.b16 %v2326
  %v2462 = vunpack.c.l.b16 %v2327
  %v2463 = vunpack.c.l.b16 %v2328
  %v2464 = vunpack.c.l.b16 %v2329
  %v2465 = vunpack.c.l.b16 %v2330
  %v2466 = vunpack.c.l.b16 %v2331
  %v2467 = vunpack.c.l.b16 %v2332
  %v2468 = vpack.c.b16 %v2405, %v2404
  %v2469 = vpack.c.b16 %v2407, %v2406
  %v2470 = vpack.c.b16 %v2409, %v2408
  %v2471 = vpack.c.b16 %v2411, %v2410
  %v2472 = vpack.c.b16 %v2413, %v2412
  %v2473 = vpack.c.b16 %v2415, %v2414
  %v2474 = vpack.c.b16 %v2417, %v2416
  %v2475 = vpack.c.b16 %v2419, %v2418
  %v2476 = vpack.c.b16 %v2421, %v2420
  %v2477 = vpack.c.b16 %v2423, %v2422
  %v2478 = vpack.c.b16 %v2425, %v2424
  %v2479 = vpack.c.b16 %v2427, %v2426
  %v2480 = vpack.c.b16 %v2429, %v2428
  %v2481 = vpack.c.b16 %v2431, %v2430
  %v2482 = vpack.c.b16 %v2433, %v2432
  %v2483 = vpack.c.b16 %v2435, %v2434
  %v2484 = vpack.c.b16 %v2437, %v2436
  %v2485 = vpack.c.b16 %v2439, %v2438
  %v2486 = vpack.c.b16 %v2441, %v2440
  %v2487 = vpack.c.b16 %v2443, %v2442
  %v2488 = vpack.c.b16 %v2445, %v2444
  %v2489 = vpack.c.b16 %v2447, %v2446
  %v2490 = vpack.c.b16 %v2449, %v2448
  %v2491 = vpack.c.b16 %v2451, %v2450
  %v2492 = vpack.c.b16 %v2453, %v2452
  %v2493 = vpack.c.b16 %v2455, %v2454
  %v2494 = vpack.c.b16 %v2457, %v2456
  %v2495 = vpack.c.b16 %v2459, %v2458
  %v2496 = vpack.c.b16 %v2461, %v2460
  %v2497 = vpack.c.b16 %v2463, %v2462
  %v2498 = vpack.c.b16 %v2465, %v2464
  %v2499 = vpack.c.b16 %v2467, %v2466
  %2532 = vmatprep.subr.bf16.mxu0 0
  %2533 = vmatpush1.bf16.msra.mxu0 %v2468
  %2534 = vmatprep.subr.bf16.mxu0 0
  %2535 = vmatpush1.bf16.msra.mxu0 %v2469
  %2536 = vmatprep.subr.bf16.mxu0 0
  %2537 = vmatpush1.bf16.msra.mxu0 %v2470
  %2538 = vmatprep.subr.bf16.mxu0 0
  %2539 = vmatpush1.bf16.msra.mxu0 %v2471
  %2540 = vmatprep.subr.bf16.mxu0 0
  %2541 = vmatpush1.bf16.msra.mxu0 %v2472
  %2542 = vmatprep.subr.bf16.mxu0 0
  %2543 = vmatpush1.bf16.msra.mxu0 %v2473
  %2544 = vmatprep.subr.bf16.mxu0 0
  %2545 = vmatpush1.bf16.msra.mxu0 %v2474
  %2546 = vmatprep.subr.bf16.mxu0 0
  %2547 = vmatpush1.bf16.msra.mxu0 %v2475
  %2548 = vmatprep.subr.bf16.mxu0 0
  %2549 = vmatpush1.bf16.msra.mxu0 %v2476
  %2550 = vmatprep.subr.bf16.mxu0 0
  %2551 = vmatpush1.bf16.msra.mxu0 %v2477
  %2552 = vmatprep.subr.bf16.mxu0 0
  %2553 = vmatpush1.bf16.msra.mxu0 %v2478
  %2554 = vmatprep.subr.bf16.mxu0 0
  %2555 = vmatpush1.bf16.msra.mxu0 %v2479
  %2556 = vmatprep.subr.bf16.mxu0 0
  %2557 = vmatpush1.bf16.msra.mxu0 %v2480
  %2558 = vmatprep.subr.bf16.mxu0 0
  %2559 = vmatpush1.bf16.msra.mxu0 %v2481
  %2560 = vmatprep.subr.bf16.mxu0 0
  %2561 = vmatpush1.bf16.msra.mxu0 %v2482
  %2562 = vmatprep.subr.bf16.mxu0 0
  %2563 = vmatpush1.bf16.msra.mxu0 %v2483
  %2564 = vmatprep.mubr.bf16.mxu0 %v2235
  %2565 = vmatmul.mubr.bf16.gmra.mrb[0].mxu0 %v2219
  %v2566 = vpop.f32.mrb[0].mxu0
  %v2567 = vadd.f32 %v2338, %v2566
  %v2568 = vpop.f32.mrb[0].mxu0
  %v2569 = vpop.f32.mrb[0].mxu0
  %v2570 = vpop.f32.mrb[0].mxu0
  %2571 = vdwg.mxu0
  %2572 = vmatprep.subr.bf16.mxu0 0
  %2573 = vmatpush1.bf16.msra.mxu0 %v2484
  %2574 = vmatprep.subr.bf16.mxu0 0
  %2575 = vmatpush1.bf16.msra.mxu0 %v2485
  %2576 = vmatprep.subr.bf16.mxu0 0
  %2577 = vmatpush1.bf16.msra.mxu0 %v2486
  %2578 = vmatprep.subr.bf16.mxu0 0
  %2579 = vmatpush1.bf16.msra.mxu0 %v2487
  %2580 = vmatprep.subr.bf16.mxu0 0
  %2581 = vmatpush1.bf16.msra.mxu0 %v2488
  %2582 = vmatprep.subr.bf16.mxu0 0
  %2583 = vmatpush1.bf16.msra.mxu0 %v2489
  %2584 = vmatprep.subr.bf16.mxu0 0
  %2585 = vmatpush1.bf16.msra.mxu0 %v2490
  %2586 = vmatprep.subr.bf16.mxu0 0
  %2587 = vmatpush1.bf16.msra.mxu0 %v2491
  %2588 = vmatprep.subr.bf16.mxu0 0
  %2589 = vmatpush1.bf16.msra.mxu0 %v2492
  %2590 = vmatprep.subr.bf16.mxu0 0
  %2591 = vmatpush1.bf16.msra.mxu0 %v2493
  %2592 = vmatprep.subr.bf16.mxu0 0
  %2593 = vmatpush1.bf16.msra.mxu0 %v2494
  %2594 = vmatprep.subr.bf16.mxu0 0
  %2595 = vmatpush1.bf16.msra.mxu0 %v2495
  %2596 = vmatprep.subr.bf16.mxu0 0
  %2597 = vmatpush1.bf16.msra.mxu0 %v2496
  %2598 = vmatprep.subr.bf16.mxu0 0
  %2599 = vmatpush1.bf16.msra.mxu0 %v2497
  %2600 = vmatprep.subr.bf16.mxu0 0
  %2601 = vmatpush1.bf16.msra.mxu0 %v2498
  %2602 = vmatprep.subr.bf16.mxu0 0
  %2603 = vmatpush1.bf16.msra.mxu0 %v2499
  %2604 = vmatprep.mubr.bf16.mxu0 %v2267
  %2605 = vmatmul.mubr.bf16.gmra.mrb[0].mxu0 %v2251
  %v2606 = vpop.f32.mrb[0].mxu0
  %v2607 = vadd.f32 %v2567, %v2606
  %v2608 = vpop.f32.mrb[0].mxu0
  %v2609 = vpop.f32.mrb[0].mxu0
  %v2610 = vpop.f32.mrb[0].mxu0
  %2611 = vdwg.mxu0
  %v2612 = vmax.f32 %v2607, 0.0
  %v2613 = vpack.c.bf16 %v2612, %v2612
  %v2614 = vld [vmem:[%s7] sm:$0xf]
  %v2615 = vld [vmem:[%s7 + $0x4] sm:$0xf]
  %v2616 = vld [vmem:[%s7 + $0x8] sm:$0xf]
  %v2617 = vld [vmem:[%s7 + $0xc] sm:$0xf]
  %v2618 = vld [vmem:[%s7 + $0x10] sm:$0xf]
  %v2619 = vld [vmem:[%s7 + $0x14] sm:$0xf]
  %v2620 = vld [vmem:[%s7 + $0x18] sm:$0xf]
  %v2621 = vld [vmem:[%s7 + $0x1c] sm:$0xf]
  %v2622 = vld [vmem:[%s8] sm:$0x1]
  %v2624 = vlaneseq
  %v2625 = vshrl.u32 %v2624, 7
  %v2626 = vsub.s32 0, %v2625
  %v2627 = vrot.slane %v2622, %v2626
  %v2637 = vunpack.c.l.b16 %v2614
  %v2638 = vunpack.c.l.b16 %v2615
  %v2639 = vunpack.c.l.b16 %v2616
  %v2640 = vunpack.c.l.b16 %v2617
  %v2641 = vunpack.c.l.b16 %v2618
  %v2642 = vunpack.c.l.b16 %v2619
  %v2643 = vunpack.c.l.b16 %v2620
  %v2644 = vunpack.c.l.b16 %v2621
  %v2645 = vpack.c.b16 %v2638, %v2637
  %v2646 = vpack.c.b16 %v2640, %v2639
  %v2647 = vpack.c.b16 %v2642, %v2641
  %v2648 = vpack.c.b16 %v2644, %v2643
  %vm2653 = vcmask 523264
  %v2655 = vsel %vm2653, %v2613, 0
  %2657 = vmatprep.subr.bf16.mxu0 0
  %2658 = vmatpush1.bf16.msra.mxu0 %v2645
  %2659 = vmatprep.subr.bf16.mxu0 0
  %2660 = vmatpush1.bf16.msra.mxu0 %v2646
  %2661 = vmatprep.subr.bf16.mxu0 0
  %2662 = vmatpush1.bf16.msra.mxu0 %v2647
  %2663 = vmatprep.subr.bf16.mxu0 0
  %2664 = vmatpush1.bf16.msra.mxu0 %v2648
  %2665 = vmatprep.subr.bf16.mxu0 0
  %2666 = vmatpush1.bf16.msra.mxu0 0
  %2667 = vmatprep.subr.bf16.mxu0 0
  %2668 = vmatpush1.bf16.msra.mxu0 0
  %2669 = vmatprep.subr.bf16.mxu0 0
  %2670 = vmatpush1.bf16.msra.mxu0 0
  %2671 = vmatprep.subr.bf16.mxu0 0
  %2672 = vmatpush1.bf16.msra.mxu0 0
  %2673 = vmatprep.subr.bf16.mxu0 0
  %2674 = vmatpush1.bf16.msra.mxu0 0
  %2675 = vmatprep.subr.bf16.mxu0 0
  %2676 = vmatpush1.bf16.msra.mxu0 0
  %2677 = vmatprep.subr.bf16.mxu0 0
  %2678 = vmatpush1.bf16.msra.mxu0 0
  %2679 = vmatprep.subr.bf16.mxu0 0
  %2680 = vmatpush1.bf16.msra.mxu0 0
  %2681 = vmatprep.subr.bf16.mxu0 0
  %2682 = vmatpush1.bf16.msra.mxu0 0
  %2683 = vmatprep.subr.bf16.mxu0 0
  %2684 = vmatpush1.bf16.msra.mxu0 0
  %2685 = vmatprep.subr.bf16.mxu0 0
  %2686 = vmatpush1.bf16.msra.mxu0 0
  %2687 = vmatprep.subr.bf16.mxu0 0
  %2688 = vmatpush1.bf16.msra.mxu0 0
  %2689 = vmatprep.mubr.bf16.mxu0 0
  %2690 = vmatmul.mubr.bf16.gmra.mrb[0].mxu0 %v2655
  %v2691 = vpop.f32.mrb[0].mxu0
  %v2692 = vadd.f32 %v2627, %v2691
  %v2693 = vpop.f32.mrb[0].mxu0
  %v2694 = vpop.f32.mrb[0].mxu0
  %v2695 = vpop.f32.mrb[0].mxu0
  %2696 = vdwg.mxu0
  %2697 = vmax.xlane.f32.xlu0 %v2692
  %v2698 = vpop.xlane.xlu0 %2697
  %v2699 = vsub.f32 %v2692, %v2698
  %v2700 = vmul.f32 %v2699, 1.442695
  %v2701 = vpow.pop %v2700
  %2702 = vadd.xlane.f32.xlu0 %v2701
  %v2703 = vpop.xlane.xlu0 %2702
  %v2704 = vlog2.pop %v2703
  %v2705 = vmul.f32 %v2704, 0.6931472
  %v2706 = vsub.f32 %v2699, %v2705
  %2707 = vst [vmem:[%s9] sm:$0xff] %v2706
  // Predicated region
  $region38: #{cnn_mnist_forward.1} parent=0 // pred_check
    _
  $region39: #{cnn_mnist_forward.1} parent=0 // pred_check_branch
    %2709 = sbr.rel (0) target = $region41
  $region40: #{cnn_mnist_forward.1} parent=0 // pred_region
    _
  $region41: #{cnn_mnist_forward.1} parent=0 // pred_fallthru
    _
  // Predicated region
  $region42: #{cnn_mnist_forward.1} parent=0 // pred_check
    _
  $region43: #{cnn_mnist_forward.1} parent=0 // pred_check_branch
    %2711 = sbr.rel (0) target = $region45
  $region44: #{cnn_mnist_forward.1} parent=0 // pred_region
    _
  $region45: #{cnn_mnist_forward.1} parent=0 // pred_fallthru
    _

</llo_original>
